<compile_context>
chip_gen: v7x
topology: tpu7x:2x2x1
jax: 0.10.0
libtpu: 0.0.40
codegen_flags: <defaults>
</compile_context>

<pallas_src>
import jax
import jax.numpy as jnp
from jax.experimental import pallas as pl
from jax.experimental.pallas import tpu as pltpu

NEG_SLOPE = 0.01          # PyTorch LeakyReLU default

HW0 = 49                  # 7*7 real input pixels per batch element
M0 = 56                   # 49 padded up to a multiple of 8 (sublane aligned)


def _leaky(y):
    return jnp.where(y >= 0.0, y, NEG_SLOPE * y)


def _decoder_fused_kernel(x_ref, w1_ref, b1_ref, w2_ref, b2_ref,
                          w3_ref, b3_ref, w4_ref, b4_ref, o_ref):
    """All 4 ConvTranspose(k=2,s=2)+LeakyReLU layers for Bt batch elements.

    x_ref : (R, 256)    rows = e*56 + (i0*7+j0), lanes = input channel
    w1_ref: (256, 256)  col = q1*64 + c1
    w2_ref: (256, 512)  block-diag over q1; col = q1*128 + q2*32 + c2
    w3_ref: (128, 256)  block-diag over q2; col = q2*64 + q3*16 + c3
    w4_ref: (256, 256)  block-diag over (q2,q3); col = (q2*4+q3)*16 + t,
                        t = q4*3 + c for t<12, zero-padded for t in [12,16)
    bk_ref: (1, N)      biases tiled to match the packed columns
    o_ref : (R, 1024)   lane = q1*256 + q2*64 + q3*16 + t
    """
    f32 = jnp.float32
    x = x_ref[...]                                                     # (R, 256)

    # layer 1: 256 -> (q1, 64), one MXU-filling matmul
    h1 = _leaky(jnp.dot(x, w1_ref[...], preferred_element_type=f32) + b1_ref[...])
    # layer 2: (q1, 64) -> (q1, q2, 32), single block-diagonal matmul
    h2 = _leaky(jnp.dot(h1, w2_ref[...], preferred_element_type=f32) + b2_ref[...])

    # layers 3 + 4 fused per q1 (128-/256-lane aligned slices, no h3 scratch)
    w3 = w3_ref[...]
    b3 = b3_ref[...]
    w4 = w4_ref[...]
    b4 = b4_ref[...]
    for q1 in range(4):
        h2q = h2[:, q1 * 128:(q1 + 1) * 128]                           # (R, 128)
        h3q = _leaky(jnp.dot(h2q, w3, preferred_element_type=f32) + b3)  # (R, 256)
        yq = _leaky(jnp.dot(h3q, w4, preferred_element_type=f32) + b4)   # (R, 256)
        o_ref[:, q1 * 256:(q1 + 1) * 256] = yq


def init_decoder_params(key):
    """Deterministic synthetic params matching the PyTorch module shapes."""
    dims = [(256, 64), (64, 32), (32, 16), (16, 3)]
    params = []
    for li, (cin, cout) in enumerate(dims):
        kw, kb = jax.random.split(jax.random.fold_in(key, li))
        scale = 1.0 / jnp.sqrt(cin * 4.0)
        w = jax.random.uniform(kw, (cin, cout, 2, 2), jnp.float32, -scale, scale)
        bb = jax.random.uniform(kb, (cout,), jnp.float32, -scale, scale)
        params.append((w, bb))
    return params


def prepare_decoder_params(params):
    """PyTorch layout (w:(Cin,Cout,2,2), b:(Cout,)) -> packed kernel layout."""
    (w1, b1), (w2, b2), (w3, b3), (w4, b4) = params

    def pack(w):      # (Cin,Cout,2,2) -> (Cin, 4*Cout), col = q*Cout + c, q=di*2+dj
        cin, cout = w.shape[0], w.shape[1]
        return jnp.transpose(w, (0, 2, 3, 1)).reshape(cin, 4 * cout)

    eye4 = jnp.eye(4, dtype=jnp.float32)
    eye16 = jnp.eye(16, dtype=jnp.float32)

    w4g = jnp.pad(pack(w4), ((0, 0), (0, 4)))                          # (16, 16)
    b4g = jnp.concatenate([jnp.tile(b4, 4), jnp.zeros((4,), b4.dtype)])  # (16,)

    return (pack(w1),                         # (256, 256)
            jnp.tile(b1, 4)[None, :],         # (1, 256)
            jnp.kron(eye4, pack(w2)),         # (256, 512)
            jnp.tile(b2, 16)[None, :],        # (1, 512)
            jnp.kron(eye4, pack(w3)),         # (128, 256)
            jnp.tile(b3, 16)[None, :],        # (1, 256)
            jnp.kron(eye16, w4g),             # (256, 256)
            jnp.tile(b4g, 16)[None, :])       # (1, 256)


def _block_batch(batch):
    """Elements per grid step: big enough to amortize per-step overhead,
    small enough for VMEM, and keeping the grid >= 2 (v7x has 2 TCs)."""
    if batch >= 16:
        return 8
    if batch >= 2:
        return max(1, batch // 2)
    return 1


@jax.jit
def decoder_forward(x, prepared_params):
    """x: (B, 256*7*7) -> (B, 3, 112, 112), NCHW like PyTorch."""
    B = x.shape[0]
    w1, b1, w2, b2, w3, b3, w4, b4 = prepared_params

    bt = _block_batch(B)
    grid = -(-B // bt)                 # ceil division
    b_pad = grid * bt
    R = bt * M0

    # unflatten + (pixel-row, channel-lane) layout; pad rows 49->56, batch->b_pad
    x_rows = jnp.transpose(x.reshape(B, 256, HW0), (0, 2, 1))            # (B,49,256)
    x_rows = jnp.pad(x_rows, ((0, b_pad - B), (0, M0 - HW0), (0, 0)))    # (b_pad,56,256)
    x_rows = x_rows.reshape(b_pad * M0, 256)

    const = lambda g: (0, 0)
    out = pl.pallas_call(
        _decoder_fused_kernel,
        out_shape=jax.ShapeDtypeStruct((b_pad * M0, 1024), jnp.float32),
        grid=(grid,),
        in_specs=[
            pl.BlockSpec((R, 256), lambda g: (g, 0)),                    # x rows
            pl.BlockSpec((256, 256), const), pl.BlockSpec((1, 256), const),
            pl.BlockSpec((256, 512), const), pl.BlockSpec((1, 512), const),
            pl.BlockSpec((128, 256), const), pl.BlockSpec((1, 256), const),
            pl.BlockSpec((256, 256), const), pl.BlockSpec((1, 256), const),
        ],
        out_specs=pl.BlockSpec((R, 1024), lambda g: (g, 0)),
        compiler_params=pltpu.CompilerParams(
            dimension_semantics=("parallel",),
            vmem_limit_bytes=48 * 1024 * 1024),
    )(x_rows, w1, b1, w2, b2, w3, b3, w4, b4)

    # Single spatial de-interleave back to NCHW, once at the end.
    # rows = (e, i0, j0); lanes = (d1i,d1j, d2i,d2j, d3i,d3j, t=(d4i,d4j,c)+pad)
    o = out.reshape(b_pad, M0, 1024)[:B, :HW0]                           # (B,49,1024)
    o = o.reshape(B, 7, 7, 2, 2, 2, 2, 2, 2, 16)[..., :12]               # drop pad cols
    o = o.reshape(B, 7, 7, 2, 2, 2, 2, 2, 2, 2, 2, 3)
    #  axes: 0 b, 1 i0, 2 j0, 3 d1i, 4 d1j, 5 d2i, 6 d2j, 7 d3i, 8 d3j, 9 d4i, 10 d4j, 11 c
    o = jnp.transpose(o, (0, 11, 1, 3, 5, 7, 9, 2, 4, 6, 8, 10))
    return o.reshape(B, 3, 112, 112)


def _reference_forward(x, params):
    """Pure-JAX reference (einsum formulation of ConvTranspose2d k=2 s=2)."""
    B = x.shape[0]
    h = x.reshape(B, 256, 7, 7)
    for w, b in params:
        Cout = w.shape[1]
        Bc, Cin, H, W = h.shape
        # out[b,co,2i+di,2j+dj] = sum_ci h[b,ci,i,j] * w[ci,co,di,dj] + b[co]
        y = jnp.einsum("bcij,codk->boidjk", h, w)          # (B,Cout,H,2,W,2)
        y = y.reshape(Bc, Cout, 2 * H, 2 * W) + b[None, :, None, None]
        h = jnp.where(y >= 0.0, y, NEG_SLOPE * y)
    return h


if __name__ == "__main__":
    key = jax.random.PRNGKey(0)
    k_x, k_p = jax.random.split(key)

    B = 2
    x = jax.random.normal(k_x, (B, 256 * 7 * 7), jnp.float32)
    params = init_decoder_params(k_p)
    prepared = prepare_decoder_params(params)

    out = decoder_forward(x, prepared)
    out = jax.block_until_ready(out)
    assert out.shape == (B, 3, 112, 112), out.shape

    ref = _reference_forward(x, params)
    assert jnp.allclose(out, ref, atol=1e-4, rtol=1e-4), float(
        jnp.max(jnp.abs(out - ref)))

    print("KERNEL_OK")
</pallas_src>

<mosaic_0001>
module attributes {stable_mosaic.version = 11 : i64} {
  func.func @_decoder_fused_kernel(%arg0: i32, %arg1: memref<56x256xf32, #tpu.memory_space<vmem>>, %arg2: memref<256x256xf32, #tpu.memory_space<vmem>>, %arg3: memref<1x256xf32, #tpu.memory_space<vmem>>, %arg4: memref<256x512xf32, #tpu.memory_space<vmem>>, %arg5: memref<1x512xf32, #tpu.memory_space<vmem>>, %arg6: memref<128x256xf32, #tpu.memory_space<vmem>>, %arg7: memref<1x256xf32, #tpu.memory_space<vmem>>, %arg8: memref<256x256xf32, #tpu.memory_space<vmem>>, %arg9: memref<1x256xf32, #tpu.memory_space<vmem>>, %arg10: memref<56x1024xf32, #tpu.memory_space<vmem>>) attributes {dimension_semantics = [#tpu.dimension_semantics<parallel>], iteration_bounds = array<i64: 2>, scalar_prefetch = 0 : i64, scratch_operands = 0 : i64, tpu.core_type = #tpu.core_type<tc>, window_params = [{transform_indices = @transform_0, window_bounds = array<i64: 56, 256>}, {pipeline_mode = #tpu.pipeline_mode<synchronous>, transform_indices = @transform_1, window_bounds = array<i64: 256, 256>}, {pipeline_mode = #tpu.pipeline_mode<synchronous>, transform_indices = @transform_2, window_bounds = array<i64: 1, 256>}, {pipeline_mode = #tpu.pipeline_mode<synchronous>, transform_indices = @transform_3, window_bounds = array<i64: 256, 512>}, {pipeline_mode = #tpu.pipeline_mode<synchronous>, transform_indices = @transform_4, window_bounds = array<i64: 1, 512>}, {pipeline_mode = #tpu.pipeline_mode<synchronous>, transform_indices = @transform_5, window_bounds = array<i64: 128, 256>}, {pipeline_mode = #tpu.pipeline_mode<synchronous>, transform_indices = @transform_6, window_bounds = array<i64: 1, 256>}, {pipeline_mode = #tpu.pipeline_mode<synchronous>, transform_indices = @transform_7, window_bounds = array<i64: 256, 256>}, {pipeline_mode = #tpu.pipeline_mode<synchronous>, transform_indices = @transform_8, window_bounds = array<i64: 1, 256>}, {transform_indices = @transform_9, window_bounds = array<i64: 56, 1024>}]} {
    %c0 = arith.constant 0 : index
    %c0_0 = arith.constant 0 : index
    %0 = vector.load %arg1[%c0, %c0_0] : memref<56x256xf32, #tpu.memory_space<vmem>>, vector<56x256xf32>
    %c0_1 = arith.constant 0 : index
    %c0_2 = arith.constant 0 : index
    %1 = vector.load %arg2[%c0_1, %c0_2] : memref<256x256xf32, #tpu.memory_space<vmem>>, vector<256x256xf32>
    %cst = arith.constant dense<0.000000e+00> : vector<56x256xf32>
    %2 = tpu.matmul %0, %1, %cst {dimension_numbers = #tpu.dot_dimension_numbers<[1], [0], [0], [1], [0, 0, 1, 1], [], []>} : vector<56x256xf32>, vector<256x256xf32>, vector<56x256xf32> -> vector<56x256xf32>
    %c0_3 = arith.constant 0 : index
    %c0_4 = arith.constant 0 : index
    %3 = vector.load %arg3[%c0_3, %c0_4] : memref<1x256xf32, #tpu.memory_space<vmem>>, vector<1x256xf32>
    %4 = vector.broadcast %3 : vector<1x256xf32> to vector<56x256xf32>
    %5 = arith.addf %2, %4 : vector<56x256xf32>
    %cst_5 = arith.constant 0.000000e+00 : f32
    %6 = vector.broadcast %cst_5 : f32 to vector<56x256xf32>
    %7 = arith.cmpf oge, %5, %6 : vector<56x256xf32>
    %cst_6 = arith.constant 0.00999999977 : f32
    %8 = vector.broadcast %cst_6 : f32 to vector<56x256xf32>
    %9 = arith.mulf %8, %5 : vector<56x256xf32>
    %10 = arith.select %7, %5, %9 : vector<56x256xi1>, vector<56x256xf32>
    %c0_7 = arith.constant 0 : index
    %c0_8 = arith.constant 0 : index
    %11 = vector.load %arg4[%c0_7, %c0_8] : memref<256x512xf32, #tpu.memory_space<vmem>>, vector<256x512xf32>
    %cst_9 = arith.constant dense<0.000000e+00> : vector<56x512xf32>
    %12 = tpu.matmul %10, %11, %cst_9 {dimension_numbers = #tpu.dot_dimension_numbers<[1], [0], [0], [1], [0, 0, 1, 1], [], []>} : vector<56x256xf32>, vector<256x512xf32>, vector<56x512xf32> -> vector<56x512xf32>
    %c0_10 = arith.constant 0 : index
    %c0_11 = arith.constant 0 : index
    %13 = vector.load %arg5[%c0_10, %c0_11] : memref<1x512xf32, #tpu.memory_space<vmem>>, vector<1x512xf32>
    %14 = vector.broadcast %13 : vector<1x512xf32> to vector<56x512xf32>
    %15 = arith.addf %12, %14 : vector<56x512xf32>
    %cst_12 = arith.constant 0.000000e+00 : f32
    %16 = vector.broadcast %cst_12 : f32 to vector<56x512xf32>
    %17 = arith.cmpf oge, %15, %16 : vector<56x512xf32>
    %cst_13 = arith.constant 0.00999999977 : f32
    %18 = vector.broadcast %cst_13 : f32 to vector<56x512xf32>
    %19 = arith.mulf %18, %15 : vector<56x512xf32>
    %20 = arith.select %17, %15, %19 : vector<56x512xi1>, vector<56x512xf32>
    %c0_14 = arith.constant 0 : index
    %c0_15 = arith.constant 0 : index
    %21 = vector.load %arg6[%c0_14, %c0_15] : memref<128x256xf32, #tpu.memory_space<vmem>>, vector<128x256xf32>
    %c0_16 = arith.constant 0 : index
    %c0_17 = arith.constant 0 : index
    %22 = vector.load %arg7[%c0_16, %c0_17] : memref<1x256xf32, #tpu.memory_space<vmem>>, vector<1x256xf32>
    %c0_18 = arith.constant 0 : index
    %c0_19 = arith.constant 0 : index
    %23 = vector.load %arg8[%c0_18, %c0_19] : memref<256x256xf32, #tpu.memory_space<vmem>>, vector<256x256xf32>
    %c0_20 = arith.constant 0 : index
    %c0_21 = arith.constant 0 : index
    %24 = vector.load %arg9[%c0_20, %c0_21] : memref<1x256xf32, #tpu.memory_space<vmem>>, vector<1x256xf32>
    %25 = vector.extract_strided_slice %20 {offsets = [0, 0], sizes = [56, 128], strides = [1, 1]} : vector<56x512xf32> to vector<56x128xf32>
    %cst_22 = arith.constant dense<0.000000e+00> : vector<56x256xf32>
    %26 = tpu.matmul %25, %21, %cst_22 {dimension_numbers = #tpu.dot_dimension_numbers<[1], [0], [0], [1], [0, 0, 1, 1], [], []>} : vector<56x128xf32>, vector<128x256xf32>, vector<56x256xf32> -> vector<56x256xf32>
    %27 = vector.broadcast %22 : vector<1x256xf32> to vector<56x256xf32>
    %28 = arith.addf %26, %27 : vector<56x256xf32>
    %cst_23 = arith.constant 0.000000e+00 : f32
    %29 = vector.broadcast %cst_23 : f32 to vector<56x256xf32>
    %30 = arith.cmpf oge, %28, %29 : vector<56x256xf32>
    %cst_24 = arith.constant 0.00999999977 : f32
    %31 = vector.broadcast %cst_24 : f32 to vector<56x256xf32>
    %32 = arith.mulf %31, %28 : vector<56x256xf32>
    %33 = arith.select %30, %28, %32 : vector<56x256xi1>, vector<56x256xf32>
    %cst_25 = arith.constant dense<0.000000e+00> : vector<56x256xf32>
    %34 = tpu.matmul %33, %23, %cst_25 {dimension_numbers = #tpu.dot_dimension_numbers<[1], [0], [0], [1], [0, 0, 1, 1], [], []>} : vector<56x256xf32>, vector<256x256xf32>, vector<56x256xf32> -> vector<56x256xf32>
    %35 = vector.broadcast %24 : vector<1x256xf32> to vector<56x256xf32>
    %36 = arith.addf %34, %35 : vector<56x256xf32>
    %cst_26 = arith.constant 0.000000e+00 : f32
    %37 = vector.broadcast %cst_26 : f32 to vector<56x256xf32>
    %38 = arith.cmpf oge, %36, %37 : vector<56x256xf32>
    %cst_27 = arith.constant 0.00999999977 : f32
    %39 = vector.broadcast %cst_27 : f32 to vector<56x256xf32>
    %40 = arith.mulf %39, %36 : vector<56x256xf32>
    %41 = arith.select %38, %36, %40 : vector<56x256xi1>, vector<56x256xf32>
    %c0_28 = arith.constant 0 : index
    %c0_29 = arith.constant 0 : index
    %42 = vector.load %arg10[%c0_28, %c0_29] : memref<56x1024xf32, #tpu.memory_space<vmem>>, vector<56x256xf32>
    tpu.vector_store %arg10[%c0_28, %c0_29], %41 {strides = array<i32>} : memref<56x1024xf32, #tpu.memory_space<vmem>>, vector<56x256xf32>,
    %43 = vector.extract_strided_slice %20 {offsets = [0, 128], sizes = [56, 128], strides = [1, 1]} : vector<56x512xf32> to vector<56x128xf32>
    %cst_30 = arith.constant dense<0.000000e+00> : vector<56x256xf32>
    %44 = tpu.matmul %43, %21, %cst_30 {dimension_numbers = #tpu.dot_dimension_numbers<[1], [0], [0], [1], [0, 0, 1, 1], [], []>} : vector<56x128xf32>, vector<128x256xf32>, vector<56x256xf32> -> vector<56x256xf32>
    %45 = vector.broadcast %22 : vector<1x256xf32> to vector<56x256xf32>
    %46 = arith.addf %44, %45 : vector<56x256xf32>
    %cst_31 = arith.constant 0.000000e+00 : f32
    %47 = vector.broadcast %cst_31 : f32 to vector<56x256xf32>
    %48 = arith.cmpf oge, %46, %47 : vector<56x256xf32>
    %cst_32 = arith.constant 0.00999999977 : f32
    %49 = vector.broadcast %cst_32 : f32 to vector<56x256xf32>
    %50 = arith.mulf %49, %46 : vector<56x256xf32>
    %51 = arith.select %48, %46, %50 : vector<56x256xi1>, vector<56x256xf32>
    %cst_33 = arith.constant dense<0.000000e+00> : vector<56x256xf32>
    %52 = tpu.matmul %51, %23, %cst_33 {dimension_numbers = #tpu.dot_dimension_numbers<[1], [0], [0], [1], [0, 0, 1, 1], [], []>} : vector<56x256xf32>, vector<256x256xf32>, vector<56x256xf32> -> vector<56x256xf32>
    %53 = vector.broadcast %24 : vector<1x256xf32> to vector<56x256xf32>
    %54 = arith.addf %52, %53 : vector<56x256xf32>
    %cst_34 = arith.constant 0.000000e+00 : f32
    %55 = vector.broadcast %cst_34 : f32 to vector<56x256xf32>
    %56 = arith.cmpf oge, %54, %55 : vector<56x256xf32>
    %cst_35 = arith.constant 0.00999999977 : f32
    %57 = vector.broadcast %cst_35 : f32 to vector<56x256xf32>
    %58 = arith.mulf %57, %54 : vector<56x256xf32>
    %59 = arith.select %56, %54, %58 : vector<56x256xi1>, vector<56x256xf32>
    %c0_36 = arith.constant 0 : index
    %c256 = arith.constant 256 : index
    %60 = vector.load %arg10[%c0_36, %c256] : memref<56x1024xf32, #tpu.memory_space<vmem>>, vector<56x256xf32>
    tpu.vector_store %arg10[%c0_36, %c256], %59 {strides = array<i32>} : memref<56x1024xf32, #tpu.memory_space<vmem>>, vector<56x256xf32>,
    %61 = vector.extract_strided_slice %20 {offsets = [0, 256], sizes = [56, 128], strides = [1, 1]} : vector<56x512xf32> to vector<56x128xf32>
    %cst_37 = arith.constant dense<0.000000e+00> : vector<56x256xf32>
    %62 = tpu.matmul %61, %21, %cst_37 {dimension_numbers = #tpu.dot_dimension_numbers<[1], [0], [0], [1], [0, 0, 1, 1], [], []>} : vector<56x128xf32>, vector<128x256xf32>, vector<56x256xf32> -> vector<56x256xf32>
    %63 = vector.broadcast %22 : vector<1x256xf32> to vector<56x256xf32>
    %64 = arith.addf %62, %63 : vector<56x256xf32>
    %cst_38 = arith.constant 0.000000e+00 : f32
    %65 = vector.broadcast %cst_38 : f32 to vector<56x256xf32>
    %66 = arith.cmpf oge, %64, %65 : vector<56x256xf32>
    %cst_39 = arith.constant 0.00999999977 : f32
    %67 = vector.broadcast %cst_39 : f32 to vector<56x256xf32>
    %68 = arith.mulf %67, %64 : vector<56x256xf32>
    %69 = arith.select %66, %64, %68 : vector<56x256xi1>, vector<56x256xf32>
    %cst_40 = arith.constant dense<0.000000e+00> : vector<56x256xf32>
    %70 = tpu.matmul %69, %23, %cst_40 {dimension_numbers = #tpu.dot_dimension_numbers<[1], [0], [0], [1], [0, 0, 1, 1], [], []>} : vector<56x256xf32>, vector<256x256xf32>, vector<56x256xf32> -> vector<56x256xf32>
    %71 = vector.broadcast %24 : vector<1x256xf32> to vector<56x256xf32>
    %72 = arith.addf %70, %71 : vector<56x256xf32>
    %cst_41 = arith.constant 0.000000e+00 : f32
    %73 = vector.broadcast %cst_41 : f32 to vector<56x256xf32>
    %74 = arith.cmpf oge, %72, %73 : vector<56x256xf32>
    %cst_42 = arith.constant 0.00999999977 : f32
    %75 = vector.broadcast %cst_42 : f32 to vector<56x256xf32>
    %76 = arith.mulf %75, %72 : vector<56x256xf32>
    %77 = arith.select %74, %72, %76 : vector<56x256xi1>, vector<56x256xf32>
    %c0_43 = arith.constant 0 : index
    %c512 = arith.constant 512 : index
    %78 = vector.load %arg10[%c0_43, %c512] : memref<56x1024xf32, #tpu.memory_space<vmem>>, vector<56x256xf32>
    tpu.vector_store %arg10[%c0_43, %c512], %77 {strides = array<i32>} : memref<56x1024xf32, #tpu.memory_space<vmem>>, vector<56x256xf32>,
    %79 = vector.extract_strided_slice %20 {offsets = [0, 384], sizes = [56, 128], strides = [1, 1]} : vector<56x512xf32> to vector<56x128xf32>
    %cst_44 = arith.constant dense<0.000000e+00> : vector<56x256xf32>
    %80 = tpu.matmul %79, %21, %cst_44 {dimension_numbers = #tpu.dot_dimension_numbers<[1], [0], [0], [1], [0, 0, 1, 1], [], []>} : vector<56x128xf32>, vector<128x256xf32>, vector<56x256xf32> -> vector<56x256xf32>
    %81 = vector.broadcast %22 : vector<1x256xf32> to vector<56x256xf32>
    %82 = arith.addf %80, %81 : vector<56x256xf32>
    %cst_45 = arith.constant 0.000000e+00 : f32
    %83 = vector.broadcast %cst_45 : f32 to vector<56x256xf32>
    %84 = arith.cmpf oge, %82, %83 : vector<56x256xf32>
    %cst_46 = arith.constant 0.00999999977 : f32
    %85 = vector.broadcast %cst_46 : f32 to vector<56x256xf32>
    %86 = arith.mulf %85, %82 : vector<56x256xf32>
    %87 = arith.select %84, %82, %86 : vector<56x256xi1>, vector<56x256xf32>
    %cst_47 = arith.constant dense<0.000000e+00> : vector<56x256xf32>
    %88 = tpu.matmul %87, %23, %cst_47 {dimension_numbers = #tpu.dot_dimension_numbers<[1], [0], [0], [1], [0, 0, 1, 1], [], []>} : vector<56x256xf32>, vector<256x256xf32>, vector<56x256xf32> -> vector<56x256xf32>
    %89 = vector.broadcast %24 : vector<1x256xf32> to vector<56x256xf32>
    %90 = arith.addf %88, %89 : vector<56x256xf32>
    %cst_48 = arith.constant 0.000000e+00 : f32
    %91 = vector.broadcast %cst_48 : f32 to vector<56x256xf32>
    %92 = arith.cmpf oge, %90, %91 : vector<56x256xf32>
    %cst_49 = arith.constant 0.00999999977 : f32
    %93 = vector.broadcast %cst_49 : f32 to vector<56x256xf32>
    %94 = arith.mulf %93, %90 : vector<56x256xf32>
    %95 = arith.select %92, %90, %94 : vector<56x256xi1>, vector<56x256xf32>
    %c0_50 = arith.constant 0 : index
    %c768 = arith.constant 768 : index
    %96 = vector.load %arg10[%c0_50, %c768] : memref<56x1024xf32, #tpu.memory_space<vmem>>, vector<56x256xf32>
    tpu.vector_store %arg10[%c0_50, %c768], %95 {strides = array<i32>} : memref<56x1024xf32, #tpu.memory_space<vmem>>, vector<56x256xf32>,
    return
  }
  func.func @transform_0(%arg0: i32) -> (i32, i32) {
    %c0_i32 = arith.constant 0 : i32
    %c0_i32_0 = arith.constant 0 : i32
    return %arg0, %c0_i32 : i32, i32
  }
  func.func @transform_1(%arg0: i32) -> (i32, i32) {
    %c0_i32 = arith.constant 0 : i32
    %c0_i32_0 = arith.constant 0 : i32
    %c0_i32_1 = arith.constant 0 : i32
    return %c0_i32, %c0_i32_0 : i32, i32
  }
  func.func @transform_2(%arg0: i32) -> (i32, i32) {
    %c0_i32 = arith.constant 0 : i32
    %c0_i32_0 = arith.constant 0 : i32
    %c0_i32_1 = arith.constant 0 : i32
    return %c0_i32, %c0_i32_0 : i32, i32
  }
  func.func @transform_3(%arg0: i32) -> (i32, i32) {
    %c0_i32 = arith.constant 0 : i32
    %c0_i32_0 = arith.constant 0 : i32
    %c0_i32_1 = arith.constant 0 : i32
    return %c0_i32, %c0_i32_0 : i32, i32
  }
  func.func @transform_4(%arg0: i32) -> (i32, i32) {
    %c0_i32 = arith.constant 0 : i32
    %c0_i32_0 = arith.constant 0 : i32
    %c0_i32_1 = arith.constant 0 : i32
    return %c0_i32, %c0_i32_0 : i32, i32
  }
  func.func @transform_5(%arg0: i32) -> (i32, i32) {
    %c0_i32 = arith.constant 0 : i32
    %c0_i32_0 = arith.constant 0 : i32
    %c0_i32_1 = arith.constant 0 : i32
    return %c0_i32, %c0_i32_0 : i32, i32
  }
  func.func @transform_6(%arg0: i32) -> (i32, i32) {
    %c0_i32 = arith.constant 0 : i32
    %c0_i32_0 = arith.constant 0 : i32
    %c0_i32_1 = arith.constant 0 : i32
    return %c0_i32, %c0_i32_0 : i32, i32
  }
  func.func @transform_7(%arg0: i32) -> (i32, i32) {
    %c0_i32 = arith.constant 0 : i32
    %c0_i32_0 = arith.constant 0 : i32
    %c0_i32_1 = arith.constant 0 : i32
    return %c0_i32, %c0_i32_0 : i32, i32
  }
  func.func @transform_8(%arg0: i32) -> (i32, i32) {
    %c0_i32 = arith.constant 0 : i32
    %c0_i32_0 = arith.constant 0 : i32
    %c0_i32_1 = arith.constant 0 : i32
    return %c0_i32, %c0_i32_0 : i32, i32
  }
  func.func @transform_9(%arg0: i32) -> (i32, i32) {
    %c0_i32 = arith.constant 0 : i32
    %c0_i32_0 = arith.constant 0 : i32
    return %arg0, %c0_i32 : i32, i32
  }
}

</mosaic_0001>

<llo_original>
// kernel: decoder_forward.1
$region0: #{decoder_forward.1}
  #allocation0 [shape = 'u32[]', space=smem, size = 0x4, offset = 0x4, fixed_abs, tag = 'smem constant byte address 0x4 - core index']
  #allocation1 [shape = 'u32[144,128]{1,0:T(1,128)}', space=vmem, size = 0x12000, scoped, tag = 'internal scratch']
  %s0 = inlined_call_operand.vmem [shape: f32[112,256], index: 0, kind: input, shape index: {}]
  %s1 = inlined_call_operand.hbm [shape: f32[256,256], index: 1, kind: input, shape index: {}]
  %s2 = inlined_call_operand.hbm [shape: f32[1,256], index: 2, kind: input, shape index: {}]
  %s3 = inlined_call_operand.hbm [shape: f32[256,512], index: 3, kind: input, shape index: {}]
  %s4 = inlined_call_operand.hbm [shape: f32[1,512], index: 4, kind: input, shape index: {}]
  %s5 = inlined_call_operand.hbm [shape: f32[128,256], index: 5, kind: input, shape index: {}]
  %s6 = inlined_call_operand.hbm [shape: f32[1,256], index: 6, kind: input, shape index: {}]
  %s7 = inlined_call_operand.hbm [shape: f32[256,256], index: 7, kind: input, shape index: {}]
  %s8 = inlined_call_operand.hbm [shape: f32[1,256], index: 8, kind: input, shape index: {}]
  %s9 = inlined_call_operand.vmem [shape: f32[112,1024], index: 9, kind: output, shape index: {}]
  %s10 = sld [smem:[#allocation0]]
  $region101: #{decoder_forward.1} parent=0
    _
  %s12 = ssub.s32 1, %s10
  %s13 = scalar_select 0, %s12, %s10
  $region1: #{decoder_forward.1} parent=0
    #allocation2 [shape = 'u8[262144]{0}', space=vmem, size = 0x40000, scoped, tag = 'input window, operand 1, single buffered']
    #allocation3 [shape = 's32[2]{0}', space=sflag, size = 0x8, scoped, tag = 'scoped memory for decoder_forward.1']
    #allocation4 [shape = 'u8[1024]{0}', space=vmem, size = 0x400, scoped, tag = 'input window, operand 2, single buffered']
    #allocation5 [shape = 's32[1]{0}', space=sflag, size = 0x4, scoped, tag = 'scoped memory for decoder_forward.1']
    #allocation6 [shape = 'u8[524288]{0}', space=vmem, size = 0x80000, scoped, tag = 'input window, operand 3, single buffered']
    #allocation7 [shape = 'u8[2048]{0}', space=vmem, size = 0x800, scoped, tag = 'input window, operand 4, single buffered']
    #allocation8 [shape = 's32[1]{0}', space=sflag, size = 0x4, scoped, tag = 'scoped memory for decoder_forward.1']
    #allocation9 [shape = 'u8[131072]{0}', space=vmem, size = 0x20000, scoped, tag = 'input window, operand 5, single buffered']
    #allocation10 [shape = 'u8[1024]{0}', space=vmem, size = 0x400, scoped, tag = 'input window, operand 6, single buffered']
    #allocation11 [shape = 's32[1]{0}', space=sflag, size = 0x4, scoped, tag = 'scoped memory for decoder_forward.1']
    #allocation12 [shape = 'u8[262144]{0}', space=vmem, size = 0x40000, scoped, tag = 'input window, operand 7, single buffered']
    #allocation13 [shape = 'u8[1024]{0}', space=vmem, size = 0x400, scoped, tag = 'input window, operand 8, single buffered']
    #allocation14 [shape = 's32[1]{0}', space=sflag, size = 0x4, scoped, tag = 'scoped memory for decoder_forward.1']
    %14 = vsyncpa [#allocation3], 0
    %15 = vsyncpa [#allocation5], 0
    %16 = vsyncpa [#allocation8], 0
    %17 = vsyncpa [#allocation11], 0
    %18 = vsyncpa [#allocation14], 0
    loop: start=0, step=1, limit=4
    $region2: #{decoder_forward.1} parent=1 // loop_pre_header
      _
    $region3: #{decoder_forward.1} parent=1 // loop_header
      %s20 = sphi 0, %s24
      %p21 = scmp.ge.s32.totalorder %s20, 4
      %s30 = sphi 0, %s32
      %s33 = sphi 0, %s30
      %s34 = sphi 0, %s33
      %s50 = sphi 0, %s34
      %s54 = sphi 0, %s54
      %s56 = sphi 0, %s54
      %s57 = sphi 0, %s56
      %s71 = sphi 0, %s57
      %s75 = sphi 0, %s75
      %s77 = sphi 0, %s75
      %s78 = sphi 0, %s77
      %s92 = sphi 0, %s78
      %s96 = sphi 0, %s96
      %s98 = sphi 0, %s96
      %s99 = sphi 0, %s98
      %s113 = sphi 0, %s99
      %s117 = sphi 0, %s117
      %s119 = sphi 0, %s117
      %s120 = sphi 0, %s119
      %s134 = sphi 0, %s120
      %s138 = sphi 0, %s138
      %s140 = sphi 0, %s138
      %s141 = sphi 0, %s140
      %s155 = sphi 0, %s141
      %s159 = sphi 0, %s159
      %s161 = sphi 0, %s159
      %s162 = sphi 0, %s161
      %s176 = sphi 0, %s162
      %s180 = sphi 0, %s180
      %s182 = sphi 0, %s180
      %s183 = sphi 0, %s182
      %s197 = sphi 0, %s183
      %s201 = sphi 0, %s201
      %s203 = sphi 0, %s201
      %s204 = sphi 0, %s203
      %s218 = sphi 0, %s204
      %s224 = sphi 0, %s226
      %s227 = sphi 0, %s224
      %s228 = sphi 0, %s227
      %s244 = sphi 0, %s228
    $region4: #{decoder_forward.1} parent=1 // loop_header_branch
      %23 = sbr.rel (%p21) target = $region8
    $region5: #{decoder_forward.1} parent=1 // loop_body
      %s25 = ssub.s32 %s20, 1
      %s26 = ssub.s32 %s20, 2
      %s27 = sadd.s32 %s20, 1
      %s28 = ssub.s32 %s20, %s27
      %p29 = scmp.eq.s32.totalorder %s28, 0
      %s31 = sadd.s32 %s30, 1
      %s32 = scalar_select %p29, %s30, %s31
      %p35 = pneg %p29
      %p36 = scmp.eq.s32.totalorder %s20, 1
      %p37 = por %p35, %p36
      %p38 = scmp.ne.s32.totalorder %s30, %s33
      %p39 = scmp.eq.s32.totalorder %s20, 0
      %p40 = por %p38, %p39
      %p41 = scmp.ne.s32.totalorder %s30, %s33
      %p42 = scmp.eq.s32.totalorder %s25, 1
      %p43 = por %p41, %p42
      %p44 = scmp.ne.s32.totalorder %s33, %s34
      %p45 = scmp.eq.s32.totalorder %s25, 0
      %p46 = por %p44, %p45
      %p47 = scmp.ne.s32.totalorder %s33, %s34
      %p48 = scmp.eq.s32.totalorder %s26, 1
      %p49 = por %p47, %p48
      %p51 = scmp.ne.s32.totalorder %s34, %s50
      %p52 = scmp.eq.s32.totalorder %s26, 0
      %p53 = por %p51, %p52
      %s55 = sadd.s32 %s54, 1
      %p58 = scmp.eq.s32.totalorder %s20, 1
      %p59 = scmp.ne.s32.totalorder %s54, %s56
      %p60 = scmp.eq.s32.totalorder %s20, 0
      %p61 = por %p59, %p60
      %p62 = scmp.ne.s32.totalorder %s54, %s56
      %p63 = scmp.eq.s32.totalorder %s25, 1
      %p64 = por %p62, %p63
      %p65 = scmp.ne.s32.totalorder %s56, %s57
      %p66 = scmp.eq.s32.totalorder %s25, 0
      %p67 = por %p65, %p66
      %p68 = scmp.ne.s32.totalorder %s56, %s57
      %p69 = scmp.eq.s32.totalorder %s26, 1
      %p70 = por %p68, %p69
      %p72 = scmp.ne.s32.totalorder %s57, %s71
      %p73 = scmp.eq.s32.totalorder %s26, 0
      %p74 = por %p72, %p73
      %s76 = sadd.s32 %s75, 1
      %p79 = scmp.eq.s32.totalorder %s20, 1
      %p80 = scmp.ne.s32.totalorder %s75, %s77
      %p81 = scmp.eq.s32.totalorder %s20, 0
      %p82 = por %p80, %p81
      %p83 = scmp.ne.s32.totalorder %s75, %s77
      %p84 = scmp.eq.s32.totalorder %s25, 1
      %p85 = por %p83, %p84
      %p86 = scmp.ne.s32.totalorder %s77, %s78
      %p87 = scmp.eq.s32.totalorder %s25, 0
      %p88 = por %p86, %p87
      %p89 = scmp.ne.s32.totalorder %s77, %s78
      %p90 = scmp.eq.s32.totalorder %s26, 1
      %p91 = por %p89, %p90
      %p93 = scmp.ne.s32.totalorder %s78, %s92
      %p94 = scmp.eq.s32.totalorder %s26, 0
      %p95 = por %p93, %p94
      %s97 = sadd.s32 %s96, 1
      %p100 = scmp.eq.s32.totalorder %s20, 1
      %p101 = scmp.ne.s32.totalorder %s96, %s98
      %p102 = scmp.eq.s32.totalorder %s20, 0
      %p103 = por %p101, %p102
      %p104 = scmp.ne.s32.totalorder %s96, %s98
      %p105 = scmp.eq.s32.totalorder %s25, 1
      %p106 = por %p104, %p105
      %p107 = scmp.ne.s32.totalorder %s98, %s99
      %p108 = scmp.eq.s32.totalorder %s25, 0
      %p109 = por %p107, %p108
      %p110 = scmp.ne.s32.totalorder %s98, %s99
      %p111 = scmp.eq.s32.totalorder %s26, 1
      %p112 = por %p110, %p111
      %p114 = scmp.ne.s32.totalorder %s99, %s113
      %p115 = scmp.eq.s32.totalorder %s26, 0
      %p116 = por %p114, %p115
      %s118 = sadd.s32 %s117, 1
      %p121 = scmp.eq.s32.totalorder %s20, 1
      %p122 = scmp.ne.s32.totalorder %s117, %s119
      %p123 = scmp.eq.s32.totalorder %s20, 0
      %p124 = por %p122, %p123
      %p125 = scmp.ne.s32.totalorder %s117, %s119
      %p126 = scmp.eq.s32.totalorder %s25, 1
      %p127 = por %p125, %p126
      %p128 = scmp.ne.s32.totalorder %s119, %s120
      %p129 = scmp.eq.s32.totalorder %s25, 0
      %p130 = por %p128, %p129
      %p131 = scmp.ne.s32.totalorder %s119, %s120
      %p132 = scmp.eq.s32.totalorder %s26, 1
      %p133 = por %p131, %p132
      %p135 = scmp.ne.s32.totalorder %s120, %s134
      %p136 = scmp.eq.s32.totalorder %s26, 0
      %p137 = por %p135, %p136
      %s139 = sadd.s32 %s138, 1
      %p142 = scmp.eq.s32.totalorder %s20, 1
      %p143 = scmp.ne.s32.totalorder %s138, %s140
      %p144 = scmp.eq.s32.totalorder %s20, 0
      %p145 = por %p143, %p144
      %p146 = scmp.ne.s32.totalorder %s138, %s140
      %p147 = scmp.eq.s32.totalorder %s25, 1
      %p148 = por %p146, %p147
      %p149 = scmp.ne.s32.totalorder %s140, %s141
      %p150 = scmp.eq.s32.totalorder %s25, 0
      %p151 = por %p149, %p150
      %p152 = scmp.ne.s32.totalorder %s140, %s141
      %p153 = scmp.eq.s32.totalorder %s26, 1
      %p154 = por %p152, %p153
      %p156 = scmp.ne.s32.totalorder %s141, %s155
      %p157 = scmp.eq.s32.totalorder %s26, 0
      %p158 = por %p156, %p157
      %s160 = sadd.s32 %s159, 1
      %p163 = scmp.eq.s32.totalorder %s20, 1
      %p164 = scmp.ne.s32.totalorder %s159, %s161
      %p165 = scmp.eq.s32.totalorder %s20, 0
      %p166 = por %p164, %p165
      %p167 = scmp.ne.s32.totalorder %s159, %s161
      %p168 = scmp.eq.s32.totalorder %s25, 1
      %p169 = por %p167, %p168
      %p170 = scmp.ne.s32.totalorder %s161, %s162
      %p171 = scmp.eq.s32.totalorder %s25, 0
      %p172 = por %p170, %p171
      %p173 = scmp.ne.s32.totalorder %s161, %s162
      %p174 = scmp.eq.s32.totalorder %s26, 1
      %p175 = por %p173, %p174
      %p177 = scmp.ne.s32.totalorder %s162, %s176
      %p178 = scmp.eq.s32.totalorder %s26, 0
      %p179 = por %p177, %p178
      %s181 = sadd.s32 %s180, 1
      %p184 = scmp.eq.s32.totalorder %s20, 1
      %p185 = scmp.ne.s32.totalorder %s180, %s182
      %p186 = scmp.eq.s32.totalorder %s20, 0
      %p187 = por %p185, %p186
      %p188 = scmp.ne.s32.totalorder %s180, %s182
      %p189 = scmp.eq.s32.totalorder %s25, 1
      %p190 = por %p188, %p189
      %p191 = scmp.ne.s32.totalorder %s182, %s183
      %p192 = scmp.eq.s32.totalorder %s25, 0
      %p193 = por %p191, %p192
      %p194 = scmp.ne.s32.totalorder %s182, %s183
      %p195 = scmp.eq.s32.totalorder %s26, 1
      %p196 = por %p194, %p195
      %p198 = scmp.ne.s32.totalorder %s183, %s197
      %p199 = scmp.eq.s32.totalorder %s26, 0
      %p200 = por %p198, %p199
      %s202 = sadd.s32 %s201, 1
      %p205 = scmp.eq.s32.totalorder %s20, 1
      %p206 = scmp.ne.s32.totalorder %s201, %s203
      %p207 = scmp.eq.s32.totalorder %s20, 0
      %p208 = por %p206, %p207
      %p209 = scmp.ne.s32.totalorder %s201, %s203
      %p210 = scmp.eq.s32.totalorder %s25, 1
      %p211 = por %p209, %p210
      %p212 = scmp.ne.s32.totalorder %s203, %s204
      %p213 = scmp.eq.s32.totalorder %s25, 0
      %p214 = por %p212, %p213
      %p215 = scmp.ne.s32.totalorder %s203, %s204
      %p216 = scmp.eq.s32.totalorder %s26, 1
      %p217 = por %p215, %p216
      %p219 = scmp.ne.s32.totalorder %s204, %s218
      %p220 = scmp.eq.s32.totalorder %s26, 0
      %p221 = por %p219, %p220
      %s222 = ssub.s32 %s20, %s27
      %p223 = scmp.eq.s32.totalorder %s222, 0
      %s225 = sadd.s32 %s224, 1
      %s226 = scalar_select %p223, %s224, %s225
      %p229 = pneg %p223
      %p230 = scmp.eq.s32.totalorder %s20, 1
      %p231 = por %p229, %p230
      %p232 = scmp.ne.s32.totalorder %s224, %s227
      %p233 = scmp.eq.s32.totalorder %s20, 0
      %p234 = por %p232, %p233
      %p235 = scmp.ne.s32.totalorder %s224, %s227
      %p236 = scmp.eq.s32.totalorder %s25, 1
      %p237 = por %p235, %p236
      %p238 = scmp.ne.s32.totalorder %s227, %s228
      %p239 = scmp.eq.s32.totalorder %s25, 0
      %p240 = por %p238, %p239
      %p241 = scmp.ne.s32.totalorder %s227, %s228
      %p242 = scmp.eq.s32.totalorder %s26, 1
      %p243 = por %p241, %p242
      %p245 = scmp.ne.s32.totalorder %s228, %s244
      %p246 = scmp.eq.s32.totalorder %s26, 0
      %p247 = por %p245, %p246
      %p248 = scmp.le.s32.totalorder 1, %s20
      %p249 = scmp.lt.s32.totalorder %s20, 3
      %p250 = pnand %p248, %p249
      %p251 = pneg %p250
      // Predicated region
      $region9: #{decoder_forward.1} parent=5 // pred_check
        _
      $region10: #{decoder_forward.1} parent=5 // pred_check_branch
        %253 = sbr.rel (%p250) target = $region12
      $region11: #{decoder_forward.1} parent=5 // pred_region
        %s254 = ssub.s32 %s20, 1
        // Predicated region
        $region13: #{decoder_forward.1} parent=11 // pred_check
          %p255 = pneg %p67
        $region14: #{decoder_forward.1} parent=11 // pred_check_branch
          %257 = sbr.rel (%p255) target = $region16
        $region15: #{decoder_forward.1} parent=11 // pred_region
          %s259 = ssub.s32 8192, 8192
          %260 = vsyncadd [#allocation3], %s259
          %s261 = sshll.u32 [#allocation2], 4
          %s262 = int_to_ptr.vmem [resolvable:$true] %s261
          %267 = dma.hbm_to_vmem [thread:$0]  %s1, 8192, %s262, [#allocation3], 256, 256, 16
        $region16: #{decoder_forward.1} parent=11 // pred_fallthru
          _
        // Predicated region
        $region17: #{decoder_forward.1} parent=11 // pred_check
          %p268 = pneg %p88
        $region18: #{decoder_forward.1} parent=11 // pred_check_branch
          %270 = sbr.rel (%p268) target = $region20
        $region19: #{decoder_forward.1} parent=11 // pred_region
          %s272 = ssub.s32 32, 32
          %273 = vsyncadd [#allocation5], %s272
          %s275 = sshll.u32 [#allocation4], 4
          %s276 = int_to_ptr.vmem [resolvable:$true] %s275
          %278 = dma.hbm_to_vmem [thread:$0]  %s2, 32, %s276, [#allocation5]
        $region20: #{decoder_forward.1} parent=11 // pred_fallthru
          _
        // Predicated region
        $region21: #{decoder_forward.1} parent=11 // pred_check
          %p279 = pneg %p109
        $region22: #{decoder_forward.1} parent=11 // pred_check_branch
          %281 = sbr.rel (%p279) target = $region24
        $region23: #{decoder_forward.1} parent=11 // pred_region
          %s283 = ssub.s32 16384, 16384
          %284 = vsyncadd [#allocation5], %s283
          %s285 = sshll.u32 [#allocation6], 4
          %s286 = int_to_ptr.vmem [resolvable:$true] %s285
          %291 = dma.hbm_to_vmem [thread:$0]  %s3, 16384, %s286, [#allocation5], 512, 512, 32
        $region24: #{decoder_forward.1} parent=11 // pred_fallthru
          _
        // Predicated region
        $region25: #{decoder_forward.1} parent=11 // pred_check
          %p292 = pneg %p130
        $region26: #{decoder_forward.1} parent=11 // pred_check_branch
          %294 = sbr.rel (%p292) target = $region28
        $region27: #{decoder_forward.1} parent=11 // pred_region
          %s296 = ssub.s32 64, 64
          %297 = vsyncadd [#allocation8], %s296
          %s299 = sshll.u32 [#allocation7], 4
          %s300 = int_to_ptr.vmem [resolvable:$true] %s299
          %302 = dma.hbm_to_vmem [thread:$0]  %s4, 64, %s300, [#allocation8]
        $region28: #{decoder_forward.1} parent=11 // pred_fallthru
          _
        // Predicated region
        $region29: #{decoder_forward.1} parent=11 // pred_check
          %p303 = pneg %p151
        $region30: #{decoder_forward.1} parent=11 // pred_check_branch
          %305 = sbr.rel (%p303) target = $region32
        $region31: #{decoder_forward.1} parent=11 // pred_region
          %s307 = ssub.s32 4096, 4096
          %308 = vsyncadd [#allocation8], %s307
          %s309 = sshll.u32 [#allocation9], 4
          %s310 = int_to_ptr.vmem [resolvable:$true] %s309
          %315 = dma.hbm_to_vmem [thread:$0]  %s5, 4096, %s310, [#allocation8], 256, 256, 16
        $region32: #{decoder_forward.1} parent=11 // pred_fallthru
          _
        // Predicated region
        $region33: #{decoder_forward.1} parent=11 // pred_check
          %p316 = pneg %p172
        $region34: #{decoder_forward.1} parent=11 // pred_check_branch
          %318 = sbr.rel (%p316) target = $region36
        $region35: #{decoder_forward.1} parent=11 // pred_region
          %s320 = ssub.s32 32, 32
          %321 = vsyncadd [#allocation11], %s320
          %s323 = sshll.u32 [#allocation10], 4
          %s324 = int_to_ptr.vmem [resolvable:$true] %s323
          %326 = dma.hbm_to_vmem [thread:$0]  %s6, 32, %s324, [#allocation11]
        $region36: #{decoder_forward.1} parent=11 // pred_fallthru
          _
        // Predicated region
        $region37: #{decoder_forward.1} parent=11 // pred_check
          %p327 = pneg %p193
        $region38: #{decoder_forward.1} parent=11 // pred_check_branch
          %329 = sbr.rel (%p327) target = $region40
        $region39: #{decoder_forward.1} parent=11 // pred_region
          %s331 = ssub.s32 8192, 8192
          %332 = vsyncadd [#allocation11], %s331
          %s333 = sshll.u32 [#allocation12], 4
          %s334 = int_to_ptr.vmem [resolvable:$true] %s333
          %339 = dma.hbm_to_vmem [thread:$0]  %s7, 8192, %s334, [#allocation11], 256, 256, 16
        $region40: #{decoder_forward.1} parent=11 // pred_fallthru
          _
        // Predicated region
        $region41: #{decoder_forward.1} parent=11 // pred_check
          %p340 = pneg %p214
        $region42: #{decoder_forward.1} parent=11 // pred_check_branch
          %342 = sbr.rel (%p340) target = $region44
        $region43: #{decoder_forward.1} parent=11 // pred_region
          %s344 = ssub.s32 32, 32
          %345 = vsyncadd [#allocation14], %s344
          %s347 = sshll.u32 [#allocation13], 4
          %s348 = int_to_ptr.vmem [resolvable:$true] %s347
          %350 = dma.hbm_to_vmem [thread:$0]  %s8, 32, %s348, [#allocation14]
        $region44: #{decoder_forward.1} parent=11 // pred_fallthru
          _
      $region12: #{decoder_forward.1} parent=5 // pred_fallthru
        _
      %p351 = scmp.lt.s32.totalorder %s20, 2
      // Predicated region
      $region45: #{decoder_forward.1} parent=5 // pred_check
        %p352 = pneg %p351
      $region46: #{decoder_forward.1} parent=5 // pred_check_branch
        %354 = sbr.rel (%p352) target = $region48
      $region47: #{decoder_forward.1} parent=5 // pred_region
        // Predicated region
        $region49: #{decoder_forward.1} parent=47 // pred_check
          %p355 = pneg %p40
        $region50: #{decoder_forward.1} parent=47 // pred_check_branch
          %357 = sbr.rel (%p355) target = $region52
        $region51: #{decoder_forward.1} parent=47 // pred_region
          %s358 = smul.u32 7, %s20
          %p359 = scmp.lt.s32.totalorder %s358, 13
          %s360 = scalar_select %p359, %s358, 13
          %s361 = smul.addr %s360, 2
          %s362 = smul.addr %s361, 8
          %s363 = scalar_lea.vmem %s0, %s362
          %s364 = smul.u32 7, %s20
        $region52: #{decoder_forward.1} parent=47 // pred_fallthru
          _
      $region48: #{decoder_forward.1} parent=5 // pred_fallthru
        _
      %p365 = scmp.le.s32.totalorder 1, %s20
      %p366 = scmp.lt.s32.totalorder %s20, 3
      %p367 = pnand %p365, %p366
      %p368 = pneg %p367
      // Predicated region
      $region53: #{decoder_forward.1} parent=5 // pred_check
        _
      $region54: #{decoder_forward.1} parent=5 // pred_check_branch
        %370 = sbr.rel (%p367) target = $region56
      $region55: #{decoder_forward.1} parent=5 // pred_region
        %s371 = ssub.s32 %s20, 1
        // Predicated region
        $region57: #{decoder_forward.1} parent=55 // pred_check
          %p372 = pneg %p67
        $region58: #{decoder_forward.1} parent=55 // pred_check_branch
          %374 = sbr.rel (%p372) target = $region60
        $region59: #{decoder_forward.1} parent=55 // pred_region
          %375 = dma.done [#allocation3], 8192
        $region60: #{decoder_forward.1} parent=55 // pred_fallthru
          _
        // Predicated region
        $region61: #{decoder_forward.1} parent=55 // pred_check
          %p376 = pneg %p88
        $region62: #{decoder_forward.1} parent=55 // pred_check_branch
          %378 = sbr.rel (%p376) target = $region64
        $region63: #{decoder_forward.1} parent=55 // pred_region
          %379 = dma.done [#allocation5], 32
        $region64: #{decoder_forward.1} parent=55 // pred_fallthru
          _
        // Predicated region
        $region65: #{decoder_forward.1} parent=55 // pred_check
          %p380 = pneg %p109
        $region66: #{decoder_forward.1} parent=55 // pred_check_branch
          %382 = sbr.rel (%p380) target = $region68
        $region67: #{decoder_forward.1} parent=55 // pred_region
          %383 = dma.done [#allocation5], 16384
        $region68: #{decoder_forward.1} parent=55 // pred_fallthru
          _
        // Predicated region
        $region69: #{decoder_forward.1} parent=55 // pred_check
          %p384 = pneg %p130
        $region70: #{decoder_forward.1} parent=55 // pred_check_branch
          %386 = sbr.rel (%p384) target = $region72
        $region71: #{decoder_forward.1} parent=55 // pred_region
          %387 = dma.done [#allocation8], 64
        $region72: #{decoder_forward.1} parent=55 // pred_fallthru
          _
        // Predicated region
        $region73: #{decoder_forward.1} parent=55 // pred_check
          %p388 = pneg %p151
        $region74: #{decoder_forward.1} parent=55 // pred_check_branch
          %390 = sbr.rel (%p388) target = $region76
        $region75: #{decoder_forward.1} parent=55 // pred_region
          %391 = dma.done [#allocation8], 4096
        $region76: #{decoder_forward.1} parent=55 // pred_fallthru
          _
        // Predicated region
        $region77: #{decoder_forward.1} parent=55 // pred_check
          %p392 = pneg %p172
        $region78: #{decoder_forward.1} parent=55 // pred_check_branch
          %394 = sbr.rel (%p392) target = $region80
        $region79: #{decoder_forward.1} parent=55 // pred_region
          %395 = dma.done [#allocation11], 32
        $region80: #{decoder_forward.1} parent=55 // pred_fallthru
          _
        // Predicated region
        $region81: #{decoder_forward.1} parent=55 // pred_check
          %p396 = pneg %p193
        $region82: #{decoder_forward.1} parent=55 // pred_check_branch
          %398 = sbr.rel (%p396) target = $region84
        $region83: #{decoder_forward.1} parent=55 // pred_region
          %399 = dma.done [#allocation11], 8192
        $region84: #{decoder_forward.1} parent=55 // pred_fallthru
          _
        // Predicated region
        $region85: #{decoder_forward.1} parent=55 // pred_check
          %p400 = pneg %p214
        $region86: #{decoder_forward.1} parent=55 // pred_check_branch
          %402 = sbr.rel (%p400) target = $region88
        $region87: #{decoder_forward.1} parent=55 // pred_region
          %403 = dma.done [#allocation14], 32
        $region88: #{decoder_forward.1} parent=55 // pred_fallthru
          _
        %s404 = smul.u32 7, %s25
        %p405 = scmp.lt.s32.totalorder %s404, 13
        %s406 = scalar_select %p405, %s404, 13
        %s407 = smul.addr %s406, 2
        %s408 = smul.addr %s407, 8
        %s409 = scalar_lea.vmem %s0, %s408
        %p410 = pneg %p46
        %p411 = pneg %p43
        %p412 = pneg %p67
        %p413 = pneg %p64
        %p414 = pneg %p88
        %p415 = pneg %p85
        %p416 = pneg %p109
        %p417 = pneg %p106
        %p418 = pneg %p130
        %p419 = pneg %p127
        %p420 = pneg %p151
        %p421 = pneg %p148
        %p422 = pneg %p172
        %p423 = pneg %p169
        %p424 = pneg %p193
        %p425 = pneg %p190
        %p426 = pneg %p214
        %p427 = pneg %p211
        %p428 = pneg %p240
        %p429 = pneg %p237
        %s430 = smul.u32 7, %s25
        %p431 = scmp.lt.s32.totalorder %s430, 13
        %s432 = scalar_select %p431, %s430, 13
        %s433 = smul.addr %s432, 8
        %s434 = smul.addr %s433, 8
        %s435 = scalar_lea.vmem %s9, %s434
        %s436 = smul.u32 7, %s25
        %p437 = scmp.lt.s32.totalorder %s436, 13
        %s438 = scalar_select %p437, %s436, 13
        %s439 = smul.addr %s438, 2
        %s440 = smul.addr %s439, 8
        %s441 = scalar_lea.vmem %s0, %s440
        %s442 = smul.u32 7, %s25
        %s443 = smul.u32 7, %s25
        %p444 = scmp.lt.s32.totalorder %s443, 13
        %s445 = scalar_select %p444, %s443, 13
        %s446 = smul.addr %s445, 8
        %s447 = smul.addr %s446, 8
        %s448 = scalar_lea.vmem %s9, %s447
        %s449 = smul.u32 7, %s25
        %v450 = vld [vmem:[%s441] sm:$0xff]
        %v451 = vld [vmem:[%s441 + $0x8] sm:$0xff]
        %v452 = vld [vmem:[%s441 + $0x10] sm:$0xff]
        %v453 = vld [vmem:[%s441 + $0x18] sm:$0xff]
        %v454 = vld [vmem:[%s441 + $0x20] sm:$0xff]
        %v455 = vld [vmem:[%s441 + $0x28] sm:$0xff]
        %v456 = vld [vmem:[%s441 + $0x30] sm:$0xff]
        %v457 = vld [vmem:[%s441 + $0x38] sm:$0xff]
        %v458 = vld [vmem:[%s441 + $0x40] sm:$0xff]
        %v459 = vld [vmem:[%s441 + $0x48] sm:$0xff]
        %v460 = vld [vmem:[%s441 + $0x50] sm:$0xff]
        %v461 = vld [vmem:[%s441 + $0x58] sm:$0xff]
        %v462 = vld [vmem:[%s441 + $0x60] sm:$0xff]
        %v463 = vld [vmem:[%s441 + $0x68] sm:$0xff]
        %v464 = vld [vmem:[#allocation2] sm:$0xff]
        %v465 = vld [vmem:[#allocation2 + $0x8] sm:$0xff]
        %v466 = vld [vmem:[#allocation2 + $0x10] sm:$0xff]
        %v467 = vld [vmem:[#allocation2 + $0x18] sm:$0xff]
        %v468 = vld [vmem:[#allocation2 + $0x20] sm:$0xff]
        %v469 = vld [vmem:[#allocation2 + $0x28] sm:$0xff]
        %v470 = vld [vmem:[#allocation2 + $0x30] sm:$0xff]
        %v471 = vld [vmem:[#allocation2 + $0x38] sm:$0xff]
        %v472 = vld [vmem:[#allocation2 + $0x40] sm:$0xff]
        %v473 = vld [vmem:[#allocation2 + $0x48] sm:$0xff]
        %v474 = vld [vmem:[#allocation2 + $0x50] sm:$0xff]
        %v475 = vld [vmem:[#allocation2 + $0x58] sm:$0xff]
        %v476 = vld [vmem:[#allocation2 + $0x60] sm:$0xff]
        %v477 = vld [vmem:[#allocation2 + $0x68] sm:$0xff]
        %v478 = vld [vmem:[#allocation2 + $0x70] sm:$0xff]
        %v479 = vld [vmem:[#allocation2 + $0x78] sm:$0xff]
        %v480 = vld [vmem:[#allocation2 + $0x80] sm:$0xff]
        %v481 = vld [vmem:[#allocation2 + $0x88] sm:$0xff]
        %v482 = vld [vmem:[#allocation2 + $0x90] sm:$0xff]
        %v483 = vld [vmem:[#allocation2 + $0x98] sm:$0xff]
        %v484 = vld [vmem:[#allocation2 + $0xa0] sm:$0xff]
        %v485 = vld [vmem:[#allocation2 + $0xa8] sm:$0xff]
        %v486 = vld [vmem:[#allocation2 + $0xb0] sm:$0xff]
        %v487 = vld [vmem:[#allocation2 + $0xb8] sm:$0xff]
        %v488 = vld [vmem:[#allocation2 + $0xc0] sm:$0xff]
        %v489 = vld [vmem:[#allocation2 + $0xc8] sm:$0xff]
        %v490 = vld [vmem:[#allocation2 + $0xd0] sm:$0xff]
        %v491 = vld [vmem:[#allocation2 + $0xd8] sm:$0xff]
        %v492 = vld [vmem:[#allocation2 + $0xe0] sm:$0xff]
        %v493 = vld [vmem:[#allocation2 + $0xe8] sm:$0xff]
        %v494 = vld [vmem:[#allocation2 + $0xf0] sm:$0xff]
        %v495 = vld [vmem:[#allocation2 + $0xf8] sm:$0xff]
        %v496 = vld [vmem:[#allocation2 + $0x100] sm:$0xff]
        %v497 = vld [vmem:[#allocation2 + $0x108] sm:$0xff]
        %v498 = vld [vmem:[#allocation2 + $0x110] sm:$0xff]
        %v499 = vld [vmem:[#allocation2 + $0x118] sm:$0xff]
        %v500 = vld [vmem:[#allocation2 + $0x120] sm:$0xff]
        %v501 = vld [vmem:[#allocation2 + $0x128] sm:$0xff]
        %v502 = vld [vmem:[#allocation2 + $0x130] sm:$0xff]
        %v503 = vld [vmem:[#allocation2 + $0x138] sm:$0xff]
        %v504 = vld [vmem:[#allocation2 + $0x140] sm:$0xff]
        %v505 = vld [vmem:[#allocation2 + $0x148] sm:$0xff]
        %v506 = vld [vmem:[#allocation2 + $0x150] sm:$0xff]
        %v507 = vld [vmem:[#allocation2 + $0x158] sm:$0xff]
        %v508 = vld [vmem:[#allocation2 + $0x160] sm:$0xff]
        %v509 = vld [vmem:[#allocation2 + $0x168] sm:$0xff]
        %v510 = vld [vmem:[#allocation2 + $0x170] sm:$0xff]
        %v511 = vld [vmem:[#allocation2 + $0x178] sm:$0xff]
        %v512 = vld [vmem:[#allocation2 + $0x180] sm:$0xff]
        %v513 = vld [vmem:[#allocation2 + $0x188] sm:$0xff]
        %v514 = vld [vmem:[#allocation2 + $0x190] sm:$0xff]
        %v515 = vld [vmem:[#allocation2 + $0x198] sm:$0xff]
        %v516 = vld [vmem:[#allocation2 + $0x1a0] sm:$0xff]
        %v517 = vld [vmem:[#allocation2 + $0x1a8] sm:$0xff]
        %v518 = vld [vmem:[#allocation2 + $0x1b0] sm:$0xff]
        %v519 = vld [vmem:[#allocation2 + $0x1b8] sm:$0xff]
        %v520 = vld [vmem:[#allocation2 + $0x1c0] sm:$0xff]
        %v521 = vld [vmem:[#allocation2 + $0x1c8] sm:$0xff]
        %v522 = vld [vmem:[#allocation2 + $0x1d0] sm:$0xff]
        %v523 = vld [vmem:[#allocation2 + $0x1d8] sm:$0xff]
        %v524 = vld [vmem:[#allocation2 + $0x1e0] sm:$0xff]
        %v525 = vld [vmem:[#allocation2 + $0x1e8] sm:$0xff]
        %v526 = vld [vmem:[#allocation2 + $0x1f0] sm:$0xff]
        %v527 = vld [vmem:[#allocation2 + $0x1f8] sm:$0xff]
        %v528 = vld [vmem:[#allocation4] sm:$0x3]
        %v530 = vlaneseq
        %v531 = vshrl.u32 %v530, 7
        %v532 = vsub.s32 0, %v531
        %v533 = vrot.slane %v528, %v532
        %v534 = vlaneseq
        %v535 = vshrl.u32 %v534, 7
        %v536 = vsub.s32 1, %v535
        %v537 = vrot.slane %v528, %v536
        %540 = vmatprep.subr.mxu0 %v465
        %541 = vmatpush1.msra.mxu0 %v464
        %542 = vmatprep.subr.mxu0 %v467
        %543 = vmatpush1.msra.mxu0 %v466
        %544 = vmatprep.subr.mxu0 %v469
        %545 = vmatpush1.msra.mxu0 %v468
        %546 = vmatprep.subr.mxu0 %v471
        %547 = vmatpush1.msra.mxu0 %v470
        %548 = vmatprep.subr.mxu0 %v473
        %549 = vmatpush1.msra.mxu0 %v472
        %550 = vmatprep.subr.mxu0 %v475
        %551 = vmatpush1.msra.mxu0 %v474
        %552 = vmatprep.subr.mxu0 %v477
        %553 = vmatpush1.msra.mxu0 %v476
        %554 = vmatprep.subr.mxu0 %v479
        %555 = vmatpush1.msra.mxu0 %v478
        %556 = vmatprep.subr.mxu0 %v481
        %557 = vmatpush1.msra.mxu0 %v480
        %558 = vmatprep.subr.mxu0 %v483
        %559 = vmatpush1.msra.mxu0 %v482
        %560 = vmatprep.subr.mxu0 %v485
        %561 = vmatpush1.msra.mxu0 %v484
        %562 = vmatprep.subr.mxu0 %v487
        %563 = vmatpush1.msra.mxu0 %v486
        %564 = vmatprep.subr.mxu0 %v489
        %565 = vmatpush1.msra.mxu0 %v488
        %566 = vmatprep.subr.mxu0 %v491
        %567 = vmatpush1.msra.mxu0 %v490
        %568 = vmatprep.subr.mxu0 %v493
        %569 = vmatpush1.msra.mxu0 %v492
        %570 = vmatprep.subr.mxu0 %v495
        %571 = vmatpush1.msra.mxu0 %v494
        %572 = vmatprep.subr.mxu0 %v497
        %573 = vmatpush1.msra.mxu0 %v496
        %574 = vmatprep.subr.mxu0 %v499
        %575 = vmatpush1.msra.mxu0 %v498
        %576 = vmatprep.subr.mxu0 %v501
        %577 = vmatpush1.msra.mxu0 %v500
        %578 = vmatprep.subr.mxu0 %v503
        %579 = vmatpush1.msra.mxu0 %v502
        %580 = vmatprep.subr.mxu0 %v505
        %581 = vmatpush1.msra.mxu0 %v504
        %582 = vmatprep.subr.mxu0 %v507
        %583 = vmatpush1.msra.mxu0 %v506
        %584 = vmatprep.subr.mxu0 %v509
        %585 = vmatpush1.msra.mxu0 %v508
        %586 = vmatprep.subr.mxu0 %v511
        %587 = vmatpush1.msra.mxu0 %v510
        %588 = vmatprep.subr.mxu0 %v513
        %589 = vmatpush1.msra.mxu0 %v512
        %590 = vmatprep.subr.mxu0 %v515
        %591 = vmatpush1.msra.mxu0 %v514
        %592 = vmatprep.subr.mxu0 %v517
        %593 = vmatpush1.msra.mxu0 %v516
        %594 = vmatprep.subr.mxu0 %v519
        %595 = vmatpush1.msra.mxu0 %v518
        %596 = vmatprep.subr.mxu0 %v521
        %597 = vmatpush1.msra.mxu0 %v520
        %598 = vmatprep.subr.mxu0 %v523
        %599 = vmatpush1.msra.mxu0 %v522
        %600 = vmatprep.subr.mxu0 %v525
        %601 = vmatpush1.msra.mxu0 %v524
        %602 = vmatprep.subr.mxu0 %v527
        %603 = vmatpush1.msra.mxu0 %v526
        %604 = vmatprep.mubr.f32.mxu0 %v451
        %605 = vmatmul.mubr.f32.gmra.mrb[0].mxu0 %v450
        %v606 = vpop.f32.mrb[0].mxu0
        %v607 = vadd.f32 %v533, %v606
        %v608 = vpop.f32.mrb[0].mxu0
        %v609 = vadd.f32 %v537, %v608
        %610 = vmatprep.mubr.f32.mxu0 %v453
        %611 = vmatmul.mubr.f32.gmra.mrb[0].mxu0 %v452
        %v612 = vpop.f32.mrb[0].mxu0
        %v613 = vadd.f32 %v533, %v612
        %v614 = vpop.f32.mrb[0].mxu0
        %v615 = vadd.f32 %v537, %v614
        %616 = vmatprep.mubr.f32.mxu0 %v455
        %617 = vmatmul.mubr.f32.gmra.mrb[0].mxu0 %v454
        %v618 = vpop.f32.mrb[0].mxu0
        %v619 = vadd.f32 %v533, %v618
        %v620 = vpop.f32.mrb[0].mxu0
        %v621 = vadd.f32 %v537, %v620
        %622 = vmatprep.mubr.f32.mxu0 %v457
        %623 = vmatmul.mubr.f32.gmra.mrb[0].mxu0 %v456
        %v624 = vpop.f32.mrb[0].mxu0
        %v625 = vadd.f32 %v533, %v624
        %v626 = vpop.f32.mrb[0].mxu0
        %v627 = vadd.f32 %v537, %v626
        %628 = vmatprep.mubr.f32.mxu0 %v459
        %629 = vmatmul.mubr.f32.gmra.mrb[0].mxu0 %v458
        %v630 = vpop.f32.mrb[0].mxu0
        %v631 = vadd.f32 %v533, %v630
        %v632 = vpop.f32.mrb[0].mxu0
        %v633 = vadd.f32 %v537, %v632
        %634 = vmatprep.mubr.f32.mxu0 %v461
        %635 = vmatmul.mubr.f32.gmra.mrb[0].mxu0 %v460
        %v636 = vpop.f32.mrb[0].mxu0
        %v637 = vadd.f32 %v533, %v636
        %v638 = vpop.f32.mrb[0].mxu0
        %v639 = vadd.f32 %v537, %v638
        %640 = vmatprep.mubr.f32.mxu0 %v463
        %641 = vmatmul.mubr.f32.gmra.mrb[0].mxu0 %v462
        %v642 = vpop.f32.mrb[0].mxu0
        %v643 = vadd.f32 %v533, %v642
        %v644 = vpop.f32.mrb[0].mxu0
        %v645 = vadd.f32 %v537, %v644
        %646 = vdwg.mxu0
        %vm647 = vcmp.ge.f32.partialorder %v607, 0.0
        %vm648 = vcmp.ge.f32.partialorder %v609, 0.0
        %vm649 = vcmp.ge.f32.partialorder %v613, 0.0
        %vm650 = vcmp.ge.f32.partialorder %v615, 0.0
        %vm651 = vcmp.ge.f32.partialorder %v619, 0.0
        %vm652 = vcmp.ge.f32.partialorder %v621, 0.0
        %vm653 = vcmp.ge.f32.partialorder %v625, 0.0
        %vm654 = vcmp.ge.f32.partialorder %v627, 0.0
        %vm655 = vcmp.ge.f32.partialorder %v631, 0.0
        %vm656 = vcmp.ge.f32.partialorder %v633, 0.0
        %vm657 = vcmp.ge.f32.partialorder %v637, 0.0
        %vm658 = vcmp.ge.f32.partialorder %v639, 0.0
        %vm659 = vcmp.ge.f32.partialorder %v643, 0.0
        %vm660 = vcmp.ge.f32.partialorder %v645, 0.0
        %v661 = vmul.f32 %v607, 0.01
        %v662 = vmul.f32 %v609, 0.01
        %v663 = vmul.f32 %v613, 0.01
        %v664 = vmul.f32 %v615, 0.01
        %v665 = vmul.f32 %v619, 0.01
        %v666 = vmul.f32 %v621, 0.01
        %v667 = vmul.f32 %v625, 0.01
        %v668 = vmul.f32 %v627, 0.01
        %v669 = vmul.f32 %v631, 0.01
        %v670 = vmul.f32 %v633, 0.01
        %v671 = vmul.f32 %v637, 0.01
        %v672 = vmul.f32 %v639, 0.01
        %v673 = vmul.f32 %v643, 0.01
        %v674 = vmul.f32 %v645, 0.01
        %v675 = vsel %vm647, %v607, %v661
        %v676 = vsel %vm648, %v609, %v662
        %v677 = vsel %vm649, %v613, %v663
        %v678 = vsel %vm650, %v615, %v664
        %v679 = vsel %vm651, %v619, %v665
        %v680 = vsel %vm652, %v621, %v666
        %v681 = vsel %vm653, %v625, %v667
        %v682 = vsel %vm654, %v627, %v668
        %v683 = vsel %vm655, %v631, %v669
        %v684 = vsel %vm656, %v633, %v670
        %v685 = vsel %vm657, %v637, %v671
        %v686 = vsel %vm658, %v639, %v672
        %v687 = vsel %vm659, %v643, %v673
        %v688 = vsel %vm660, %v645, %v674
        %v689 = vld [vmem:[#allocation6] sm:$0xff]
        %v690 = vld [vmem:[#allocation6 + $0x8] sm:$0xff]
        %v691 = vld [vmem:[#allocation6 + $0x10] sm:$0xff]
        %v692 = vld [vmem:[#allocation6 + $0x18] sm:$0xff]
        %v693 = vld [vmem:[#allocation6 + $0x20] sm:$0xff]
        %v694 = vld [vmem:[#allocation6 + $0x28] sm:$0xff]
        %v695 = vld [vmem:[#allocation6 + $0x30] sm:$0xff]
        %v696 = vld [vmem:[#allocation6 + $0x38] sm:$0xff]
        %v697 = vld [vmem:[#allocation6 + $0x40] sm:$0xff]
        %v698 = vld [vmem:[#allocation6 + $0x48] sm:$0xff]
        %v699 = vld [vmem:[#allocation6 + $0x50] sm:$0xff]
        %v700 = vld [vmem:[#allocation6 + $0x58] sm:$0xff]
        %v701 = vld [vmem:[#allocation6 + $0x60] sm:$0xff]
        %v702 = vld [vmem:[#allocation6 + $0x68] sm:$0xff]
        %v703 = vld [vmem:[#allocation6 + $0x70] sm:$0xff]
        %v704 = vld [vmem:[#allocation6 + $0x78] sm:$0xff]
        %v705 = vld [vmem:[#allocation6 + $0x80] sm:$0xff]
        %v706 = vld [vmem:[#allocation6 + $0x88] sm:$0xff]
        %v707 = vld [vmem:[#allocation6 + $0x90] sm:$0xff]
        %v708 = vld [vmem:[#allocation6 + $0x98] sm:$0xff]
        %v709 = vld [vmem:[#allocation6 + $0xa0] sm:$0xff]
        %v710 = vld [vmem:[#allocation6 + $0xa8] sm:$0xff]
        %v711 = vld [vmem:[#allocation6 + $0xb0] sm:$0xff]
        %v712 = vld [vmem:[#allocation6 + $0xb8] sm:$0xff]
        %v713 = vld [vmem:[#allocation6 + $0xc0] sm:$0xff]
        %v714 = vld [vmem:[#allocation6 + $0xc8] sm:$0xff]
        %v715 = vld [vmem:[#allocation6 + $0xd0] sm:$0xff]
        %v716 = vld [vmem:[#allocation6 + $0xd8] sm:$0xff]
        %v717 = vld [vmem:[#allocation6 + $0xe0] sm:$0xff]
        %v718 = vld [vmem:[#allocation6 + $0xe8] sm:$0xff]
        %v719 = vld [vmem:[#allocation6 + $0xf0] sm:$0xff]
        %v720 = vld [vmem:[#allocation6 + $0xf8] sm:$0xff]
        %v721 = vld [vmem:[#allocation6 + $0x100] sm:$0xff]
        %v722 = vld [vmem:[#allocation6 + $0x108] sm:$0xff]
        %v723 = vld [vmem:[#allocation6 + $0x110] sm:$0xff]
        %v724 = vld [vmem:[#allocation6 + $0x118] sm:$0xff]
        %v725 = vld [vmem:[#allocation6 + $0x120] sm:$0xff]
        %v726 = vld [vmem:[#allocation6 + $0x128] sm:$0xff]
        %v727 = vld [vmem:[#allocation6 + $0x130] sm:$0xff]
        %v728 = vld [vmem:[#allocation6 + $0x138] sm:$0xff]
        %v729 = vld [vmem:[#allocation6 + $0x140] sm:$0xff]
        %v730 = vld [vmem:[#allocation6 + $0x148] sm:$0xff]
        %v731 = vld [vmem:[#allocation6 + $0x150] sm:$0xff]
        %v732 = vld [vmem:[#allocation6 + $0x158] sm:$0xff]
        %v733 = vld [vmem:[#allocation6 + $0x160] sm:$0xff]
        %v734 = vld [vmem:[#allocation6 + $0x168] sm:$0xff]
        %v735 = vld [vmem:[#allocation6 + $0x170] sm:$0xff]
        %v736 = vld [vmem:[#allocation6 + $0x178] sm:$0xff]
        %v737 = vld [vmem:[#allocation6 + $0x180] sm:$0xff]
        %v738 = vld [vmem:[#allocation6 + $0x188] sm:$0xff]
        %v739 = vld [vmem:[#allocation6 + $0x190] sm:$0xff]
        %v740 = vld [vmem:[#allocation6 + $0x198] sm:$0xff]
        %v741 = vld [vmem:[#allocation6 + $0x1a0] sm:$0xff]
        %v742 = vld [vmem:[#allocation6 + $0x1a8] sm:$0xff]
        %v743 = vld [vmem:[#allocation6 + $0x1b0] sm:$0xff]
        %v744 = vld [vmem:[#allocation6 + $0x1b8] sm:$0xff]
        %v745 = vld [vmem:[#allocation6 + $0x1c0] sm:$0xff]
        %v746 = vld [vmem:[#allocation6 + $0x1c8] sm:$0xff]
        %v747 = vld [vmem:[#allocation6 + $0x1d0] sm:$0xff]
        %v748 = vld [vmem:[#allocation6 + $0x1d8] sm:$0xff]
        %v749 = vld [vmem:[#allocation6 + $0x1e0] sm:$0xff]
        %v750 = vld [vmem:[#allocation6 + $0x1e8] sm:$0xff]
        %v751 = vld [vmem:[#allocation6 + $0x1f0] sm:$0xff]
        %v752 = vld [vmem:[#allocation6 + $0x1f8] sm:$0xff]
        %v753 = vld [vmem:[#allocation6 + $0x200] sm:$0xff]
        %v754 = vld [vmem:[#allocation6 + $0x208] sm:$0xff]
        %v755 = vld [vmem:[#allocation6 + $0x210] sm:$0xff]
        %v756 = vld [vmem:[#allocation6 + $0x218] sm:$0xff]
        %v757 = vld [vmem:[#allocation6 + $0x220] sm:$0xff]
        %v758 = vld [vmem:[#allocation6 + $0x228] sm:$0xff]
        %v759 = vld [vmem:[#allocation6 + $0x230] sm:$0xff]
        %v760 = vld [vmem:[#allocation6 + $0x238] sm:$0xff]
        %v761 = vld [vmem:[#allocation6 + $0x240] sm:$0xff]
        %v762 = vld [vmem:[#allocation6 + $0x248] sm:$0xff]
        %v763 = vld [vmem:[#allocation6 + $0x250] sm:$0xff]
        %v764 = vld [vmem:[#allocation6 + $0x258] sm:$0xff]
        %v765 = vld [vmem:[#allocation6 + $0x260] sm:$0xff]
        %v766 = vld [vmem:[#allocation6 + $0x268] sm:$0xff]
        %v767 = vld [vmem:[#allocation6 + $0x270] sm:$0xff]
        %v768 = vld [vmem:[#allocation6 + $0x278] sm:$0xff]
        %v769 = vld [vmem:[#allocation6 + $0x280] sm:$0xff]
        %v770 = vld [vmem:[#allocation6 + $0x288] sm:$0xff]
        %v771 = vld [vmem:[#allocation6 + $0x290] sm:$0xff]
        %v772 = vld [vmem:[#allocation6 + $0x298] sm:$0xff]
        %v773 = vld [vmem:[#allocation6 + $0x2a0] sm:$0xff]
        %v774 = vld [vmem:[#allocation6 + $0x2a8] sm:$0xff]
        %v775 = vld [vmem:[#allocation6 + $0x2b0] sm:$0xff]
        %v776 = vld [vmem:[#allocation6 + $0x2b8] sm:$0xff]
        %v777 = vld [vmem:[#allocation6 + $0x2c0] sm:$0xff]
        %v778 = vld [vmem:[#allocation6 + $0x2c8] sm:$0xff]
        %v779 = vld [vmem:[#allocation6 + $0x2d0] sm:$0xff]
        %v780 = vld [vmem:[#allocation6 + $0x2d8] sm:$0xff]
        %v781 = vld [vmem:[#allocation6 + $0x2e0] sm:$0xff]
        %v782 = vld [vmem:[#allocation6 + $0x2e8] sm:$0xff]
        %v783 = vld [vmem:[#allocation6 + $0x2f0] sm:$0xff]
        %v784 = vld [vmem:[#allocation6 + $0x2f8] sm:$0xff]
        %v785 = vld [vmem:[#allocation6 + $0x300] sm:$0xff]
        %v786 = vld [vmem:[#allocation6 + $0x308] sm:$0xff]
        %v787 = vld [vmem:[#allocation6 + $0x310] sm:$0xff]
        %v788 = vld [vmem:[#allocation6 + $0x318] sm:$0xff]
        %v789 = vld [vmem:[#allocation6 + $0x320] sm:$0xff]
        %v790 = vld [vmem:[#allocation6 + $0x328] sm:$0xff]
        %v791 = vld [vmem:[#allocation6 + $0x330] sm:$0xff]
        %v792 = vld [vmem:[#allocation6 + $0x338] sm:$0xff]
        %v793 = vld [vmem:[#allocation6 + $0x340] sm:$0xff]
        %v794 = vld [vmem:[#allocation6 + $0x348] sm:$0xff]
        %v795 = vld [vmem:[#allocation6 + $0x350] sm:$0xff]
        %v796 = vld [vmem:[#allocation6 + $0x358] sm:$0xff]
        %v797 = vld [vmem:[#allocation6 + $0x360] sm:$0xff]
        %v798 = vld [vmem:[#allocation6 + $0x368] sm:$0xff]
        %v799 = vld [vmem:[#allocation6 + $0x370] sm:$0xff]
        %v800 = vld [vmem:[#allocation6 + $0x378] sm:$0xff]
        %v801 = vld [vmem:[#allocation6 + $0x380] sm:$0xff]
        %v802 = vld [vmem:[#allocation6 + $0x388] sm:$0xff]
        %v803 = vld [vmem:[#allocation6 + $0x390] sm:$0xff]
        %v804 = vld [vmem:[#allocation6 + $0x398] sm:$0xff]
        %v805 = vld [vmem:[#allocation6 + $0x3a0] sm:$0xff]
        %v806 = vld [vmem:[#allocation6 + $0x3a8] sm:$0xff]
        %v807 = vld [vmem:[#allocation6 + $0x3b0] sm:$0xff]
        %v808 = vld [vmem:[#allocation6 + $0x3b8] sm:$0xff]
        %v809 = vld [vmem:[#allocation6 + $0x3c0] sm:$0xff]
        %v810 = vld [vmem:[#allocation6 + $0x3c8] sm:$0xff]
        %v811 = vld [vmem:[#allocation6 + $0x3d0] sm:$0xff]
        %v812 = vld [vmem:[#allocation6 + $0x3d8] sm:$0xff]
        %v813 = vld [vmem:[#allocation6 + $0x3e0] sm:$0xff]
        %v814 = vld [vmem:[#allocation6 + $0x3e8] sm:$0xff]
        %v815 = vld [vmem:[#allocation6 + $0x3f0] sm:$0xff]
        %v816 = vld [vmem:[#allocation6 + $0x3f8] sm:$0xff]
        %v817 = vld [vmem:[#allocation7] sm:$0xf]
        %v819 = vlaneseq
        %v820 = vshrl.u32 %v819, 7
        %v821 = vsub.s32 0, %v820
        %v822 = vrot.slane %v817, %v821
        %v823 = vlaneseq
        %v824 = vshrl.u32 %v823, 7
        %v825 = vsub.s32 1, %v824
        %v826 = vrot.slane %v817, %v825
        %v827 = vlaneseq
        %v828 = vshrl.u32 %v827, 7
        %v829 = vsub.s32 2, %v828
        %v830 = vrot.slane %v817, %v829
        %v831 = vlaneseq
        %v832 = vshrl.u32 %v831, 7
        %v833 = vsub.s32 3, %v832
        %v834 = vrot.slane %v817, %v833
        %839 = vmatprep.subr.mxu0 %v690
        %840 = vmatpush1.msra.mxu0 %v689
        %841 = vmatprep.subr.mxu0 %v694
        %842 = vmatpush1.msra.mxu0 %v693
        %843 = vmatprep.subr.mxu0 %v698
        %844 = vmatpush1.msra.mxu0 %v697
        %845 = vmatprep.subr.mxu0 %v702
        %846 = vmatpush1.msra.mxu0 %v701
        %847 = vmatprep.subr.mxu0 %v706
        %848 = vmatpush1.msra.mxu0 %v705
        %849 = vmatprep.subr.mxu0 %v710
        %850 = vmatpush1.msra.mxu0 %v709
        %851 = vmatprep.subr.mxu0 %v714
        %852 = vmatpush1.msra.mxu0 %v713
        %853 = vmatprep.subr.mxu0 %v718
        %854 = vmatpush1.msra.mxu0 %v717
        %855 = vmatprep.subr.mxu0 %v722
        %856 = vmatpush1.msra.mxu0 %v721
        %857 = vmatprep.subr.mxu0 %v726
        %858 = vmatpush1.msra.mxu0 %v725
        %859 = vmatprep.subr.mxu0 %v730
        %860 = vmatpush1.msra.mxu0 %v729
        %861 = vmatprep.subr.mxu0 %v734
        %862 = vmatpush1.msra.mxu0 %v733
        %863 = vmatprep.subr.mxu0 %v738
        %864 = vmatpush1.msra.mxu0 %v737
        %865 = vmatprep.subr.mxu0 %v742
        %866 = vmatpush1.msra.mxu0 %v741
        %867 = vmatprep.subr.mxu0 %v746
        %868 = vmatpush1.msra.mxu0 %v745
        %869 = vmatprep.subr.mxu0 %v750
        %870 = vmatpush1.msra.mxu0 %v749
        %871 = vmatprep.subr.mxu0 %v754
        %872 = vmatpush1.msra.mxu0 %v753
        %873 = vmatprep.subr.mxu0 %v758
        %874 = vmatpush1.msra.mxu0 %v757
        %875 = vmatprep.subr.mxu0 %v762
        %876 = vmatpush1.msra.mxu0 %v761
        %877 = vmatprep.subr.mxu0 %v766
        %878 = vmatpush1.msra.mxu0 %v765
        %879 = vmatprep.subr.mxu0 %v770
        %880 = vmatpush1.msra.mxu0 %v769
        %881 = vmatprep.subr.mxu0 %v774
        %882 = vmatpush1.msra.mxu0 %v773
        %883 = vmatprep.subr.mxu0 %v778
        %884 = vmatpush1.msra.mxu0 %v777
        %885 = vmatprep.subr.mxu0 %v782
        %886 = vmatpush1.msra.mxu0 %v781
        %887 = vmatprep.subr.mxu0 %v786
        %888 = vmatpush1.msra.mxu0 %v785
        %889 = vmatprep.subr.mxu0 %v790
        %890 = vmatpush1.msra.mxu0 %v789
        %891 = vmatprep.subr.mxu0 %v794
        %892 = vmatpush1.msra.mxu0 %v793
        %893 = vmatprep.subr.mxu0 %v798
        %894 = vmatpush1.msra.mxu0 %v797
        %895 = vmatprep.subr.mxu0 %v802
        %896 = vmatpush1.msra.mxu0 %v801
        %897 = vmatprep.subr.mxu0 %v806
        %898 = vmatpush1.msra.mxu0 %v805
        %899 = vmatprep.subr.mxu0 %v810
        %900 = vmatpush1.msra.mxu0 %v809
        %901 = vmatprep.subr.mxu0 %v814
        %902 = vmatpush1.msra.mxu0 %v813
        %903 = vmatprep.mubr.f32.mxu0 %v676
        %904 = vmatmul.mubr.f32.gmra.mrb[0].mxu0 %v675
        %v905 = vpop.f32.mrb[0].mxu0
        %v906 = vadd.f32 %v822, %v905
        %v907 = vpop.f32.mrb[0].mxu0
        %v908 = vadd.f32 %v826, %v907
        %909 = vmatprep.mubr.f32.mxu0 %v678
        %910 = vmatmul.mubr.f32.gmra.mrb[0].mxu0 %v677
        %v911 = vpop.f32.mrb[0].mxu0
        %v912 = vadd.f32 %v822, %v911
        %v913 = vpop.f32.mrb[0].mxu0
        %v914 = vadd.f32 %v826, %v913
        %915 = vmatprep.mubr.f32.mxu0 %v680
        %916 = vmatmul.mubr.f32.gmra.mrb[0].mxu0 %v679
        %v917 = vpop.f32.mrb[0].mxu0
        %v918 = vadd.f32 %v822, %v917
        %v919 = vpop.f32.mrb[0].mxu0
        %v920 = vadd.f32 %v826, %v919
        %921 = vmatprep.mubr.f32.mxu0 %v682
        %922 = vmatmul.mubr.f32.gmra.mrb[0].mxu0 %v681
        %v923 = vpop.f32.mrb[0].mxu0
        %v924 = vadd.f32 %v822, %v923
        %v925 = vpop.f32.mrb[0].mxu0
        %v926 = vadd.f32 %v826, %v925
        %927 = vmatprep.mubr.f32.mxu0 %v684
        %928 = vmatmul.mubr.f32.gmra.mrb[0].mxu0 %v683
        %v929 = vpop.f32.mrb[0].mxu0
        %v930 = vadd.f32 %v822, %v929
        %v931 = vpop.f32.mrb[0].mxu0
        %v932 = vadd.f32 %v826, %v931
        %933 = vmatprep.mubr.f32.mxu0 %v686
        %934 = vmatmul.mubr.f32.gmra.mrb[0].mxu0 %v685
        %v935 = vpop.f32.mrb[0].mxu0
        %v936 = vadd.f32 %v822, %v935
        %v937 = vpop.f32.mrb[0].mxu0
        %v938 = vadd.f32 %v826, %v937
        %939 = vmatprep.mubr.f32.mxu0 %v688
        %940 = vmatmul.mubr.f32.gmra.mrb[0].mxu0 %v687
        %v941 = vpop.f32.mrb[0].mxu0
        %v942 = vadd.f32 %v822, %v941
        %v943 = vpop.f32.mrb[0].mxu0
        %v944 = vadd.f32 %v826, %v943
        %945 = vdwg.mxu0
        %946 = vmatprep.subr.mxu0 %v692
        %947 = vmatpush1.msra.mxu0 %v691
        %948 = vmatprep.subr.mxu0 %v696
        %949 = vmatpush1.msra.mxu0 %v695
        %950 = vmatprep.subr.mxu0 %v700
        %951 = vmatpush1.msra.mxu0 %v699
        %952 = vmatprep.subr.mxu0 %v704
        %953 = vmatpush1.msra.mxu0 %v703
        %954 = vmatprep.subr.mxu0 %v708
        %955 = vmatpush1.msra.mxu0 %v707
        %956 = vmatprep.subr.mxu0 %v712
        %957 = vmatpush1.msra.mxu0 %v711
        %958 = vmatprep.subr.mxu0 %v716
        %959 = vmatpush1.msra.mxu0 %v715
        %960 = vmatprep.subr.mxu0 %v720
        %961 = vmatpush1.msra.mxu0 %v719
        %962 = vmatprep.subr.mxu0 %v724
        %963 = vmatpush1.msra.mxu0 %v723
        %964 = vmatprep.subr.mxu0 %v728
        %965 = vmatpush1.msra.mxu0 %v727
        %966 = vmatprep.subr.mxu0 %v732
        %967 = vmatpush1.msra.mxu0 %v731
        %968 = vmatprep.subr.mxu0 %v736
        %969 = vmatpush1.msra.mxu0 %v735
        %970 = vmatprep.subr.mxu0 %v740
        %971 = vmatpush1.msra.mxu0 %v739
        %972 = vmatprep.subr.mxu0 %v744
        %973 = vmatpush1.msra.mxu0 %v743
        %974 = vmatprep.subr.mxu0 %v748
        %975 = vmatpush1.msra.mxu0 %v747
        %976 = vmatprep.subr.mxu0 %v752
        %977 = vmatpush1.msra.mxu0 %v751
        %978 = vmatprep.subr.mxu0 %v756
        %979 = vmatpush1.msra.mxu0 %v755
        %980 = vmatprep.subr.mxu0 %v760
        %981 = vmatpush1.msra.mxu0 %v759
        %982 = vmatprep.subr.mxu0 %v764
        %983 = vmatpush1.msra.mxu0 %v763
        %984 = vmatprep.subr.mxu0 %v768
        %985 = vmatpush1.msra.mxu0 %v767
        %986 = vmatprep.subr.mxu0 %v772
        %987 = vmatpush1.msra.mxu0 %v771
        %988 = vmatprep.subr.mxu0 %v776
        %989 = vmatpush1.msra.mxu0 %v775
        %990 = vmatprep.subr.mxu0 %v780
        %991 = vmatpush1.msra.mxu0 %v779
        %992 = vmatprep.subr.mxu0 %v784
        %993 = vmatpush1.msra.mxu0 %v783
        %994 = vmatprep.subr.mxu0 %v788
        %995 = vmatpush1.msra.mxu0 %v787
        %996 = vmatprep.subr.mxu0 %v792
        %997 = vmatpush1.msra.mxu0 %v791
        %998 = vmatprep.subr.mxu0 %v796
        %999 = vmatpush1.msra.mxu0 %v795
        %1000 = vmatprep.subr.mxu0 %v800
        %1001 = vmatpush1.msra.mxu0 %v799
        %1002 = vmatprep.subr.mxu0 %v804
        %1003 = vmatpush1.msra.mxu0 %v803
        %1004 = vmatprep.subr.mxu0 %v808
        %1005 = vmatpush1.msra.mxu0 %v807
        %1006 = vmatprep.subr.mxu0 %v812
        %1007 = vmatpush1.msra.mxu0 %v811
        %1008 = vmatprep.subr.mxu0 %v816
        %1009 = vmatpush1.msra.mxu0 %v815
        %1010 = vmatprep.mubr.f32.mxu0 %v676
        %1011 = vmatmul.mubr.f32.gmra.mrb[0].mxu0 %v675
        %v1012 = vpop.f32.mrb[0].mxu0
        %v1013 = vadd.f32 %v830, %v1012
        %v1014 = vpop.f32.mrb[0].mxu0
        %v1015 = vadd.f32 %v834, %v1014
        %1016 = vmatprep.mubr.f32.mxu0 %v678
        %1017 = vmatmul.mubr.f32.gmra.mrb[0].mxu0 %v677
        %v1018 = vpop.f32.mrb[0].mxu0
        %v1019 = vadd.f32 %v830, %v1018
        %v1020 = vpop.f32.mrb[0].mxu0
        %v1021 = vadd.f32 %v834, %v1020
        %1022 = vmatprep.mubr.f32.mxu0 %v680
        %1023 = vmatmul.mubr.f32.gmra.mrb[0].mxu0 %v679
        %v1024 = vpop.f32.mrb[0].mxu0
        %v1025 = vadd.f32 %v830, %v1024
        %v1026 = vpop.f32.mrb[0].mxu0
        %v1027 = vadd.f32 %v834, %v1026
        %1028 = vmatprep.mubr.f32.mxu0 %v682
        %1029 = vmatmul.mubr.f32.gmra.mrb[0].mxu0 %v681
        %v1030 = vpop.f32.mrb[0].mxu0
        %v1031 = vadd.f32 %v830, %v1030
        %v1032 = vpop.f32.mrb[0].mxu0
        %v1033 = vadd.f32 %v834, %v1032
        %1034 = vmatprep.mubr.f32.mxu0 %v684
        %1035 = vmatmul.mubr.f32.gmra.mrb[0].mxu0 %v683
        %v1036 = vpop.f32.mrb[0].mxu0
        %v1037 = vadd.f32 %v830, %v1036
        %v1038 = vpop.f32.mrb[0].mxu0
        %v1039 = vadd.f32 %v834, %v1038
        %1040 = vmatprep.mubr.f32.mxu0 %v686
        %1041 = vmatmul.mubr.f32.gmra.mrb[0].mxu0 %v685
        %v1042 = vpop.f32.mrb[0].mxu0
        %v1043 = vadd.f32 %v830, %v1042
        %v1044 = vpop.f32.mrb[0].mxu0
        %v1045 = vadd.f32 %v834, %v1044
        %1046 = vmatprep.mubr.f32.mxu0 %v688
        %1047 = vmatmul.mubr.f32.gmra.mrb[0].mxu0 %v687
        %v1048 = vpop.f32.mrb[0].mxu0
        %v1049 = vadd.f32 %v830, %v1048
        %v1050 = vpop.f32.mrb[0].mxu0
        %v1051 = vadd.f32 %v834, %v1050
        %1052 = vdwg.mxu0
        %vm1053 = vcmp.ge.f32.partialorder %v906, 0.0
        %vm1054 = vcmp.ge.f32.partialorder %v908, 0.0
        %vm1055 = vcmp.ge.f32.partialorder %v1013, 0.0
        %vm1056 = vcmp.ge.f32.partialorder %v1015, 0.0
        %vm1057 = vcmp.ge.f32.partialorder %v912, 0.0
        %vm1058 = vcmp.ge.f32.partialorder %v914, 0.0
        %vm1059 = vcmp.ge.f32.partialorder %v1019, 0.0
        %vm1060 = vcmp.ge.f32.partialorder %v1021, 0.0
        %vm1061 = vcmp.ge.f32.partialorder %v918, 0.0
        %vm1062 = vcmp.ge.f32.partialorder %v920, 0.0
        %vm1063 = vcmp.ge.f32.partialorder %v1025, 0.0
        %vm1064 = vcmp.ge.f32.partialorder %v1027, 0.0
        %vm1065 = vcmp.ge.f32.partialorder %v924, 0.0
        %vm1066 = vcmp.ge.f32.partialorder %v926, 0.0
        %vm1067 = vcmp.ge.f32.partialorder %v1031, 0.0
        %vm1068 = vcmp.ge.f32.partialorder %v1033, 0.0
        %vm1069 = vcmp.ge.f32.partialorder %v930, 0.0
        %vm1070 = vcmp.ge.f32.partialorder %v932, 0.0
        %vm1071 = vcmp.ge.f32.partialorder %v1037, 0.0
        %vm1072 = vcmp.ge.f32.partialorder %v1039, 0.0
        %vm1073 = vcmp.ge.f32.partialorder %v936, 0.0
        %vm1074 = vcmp.ge.f32.partialorder %v938, 0.0
        %vm1075 = vcmp.ge.f32.partialorder %v1043, 0.0
        %vm1076 = vcmp.ge.f32.partialorder %v1045, 0.0
        %vm1077 = vcmp.ge.f32.partialorder %v942, 0.0
        %vm1078 = vcmp.ge.f32.partialorder %v944, 0.0
        %vm1079 = vcmp.ge.f32.partialorder %v1049, 0.0
        %vm1080 = vcmp.ge.f32.partialorder %v1051, 0.0
        %v1081 = vmul.f32 %v906, 0.01
        %v1082 = vmul.f32 %v908, 0.01
        %v1083 = vmul.f32 %v1013, 0.01
        %v1084 = vmul.f32 %v1015, 0.01
        %v1085 = vmul.f32 %v912, 0.01
        %v1086 = vmul.f32 %v914, 0.01
        %v1087 = vmul.f32 %v1019, 0.01
        %v1088 = vmul.f32 %v1021, 0.01
        %v1089 = vmul.f32 %v918, 0.01
        %v1090 = vmul.f32 %v920, 0.01
        %v1091 = vmul.f32 %v1025, 0.01
        %v1092 = vmul.f32 %v1027, 0.01
        %v1093 = vmul.f32 %v924, 0.01
        %v1094 = vmul.f32 %v926, 0.01
        %v1095 = vmul.f32 %v1031, 0.01
        %v1096 = vmul.f32 %v1033, 0.01
        %v1097 = vmul.f32 %v930, 0.01
        %v1098 = vmul.f32 %v932, 0.01
        %v1099 = vmul.f32 %v1037, 0.01
        %v1100 = vmul.f32 %v1039, 0.01
        %v1101 = vmul.f32 %v936, 0.01
        %v1102 = vmul.f32 %v938, 0.01
        %v1103 = vmul.f32 %v1043, 0.01
        %v1104 = vmul.f32 %v1045, 0.01
        %v1105 = vmul.f32 %v942, 0.01
        %v1106 = vmul.f32 %v944, 0.01
        %v1107 = vmul.f32 %v1049, 0.01
        %v1108 = vmul.f32 %v1051, 0.01
        %v1109 = vsel %vm1053, %v906, %v1081
        %v1110 = vsel %vm1054, %v908, %v1082
        %v1111 = vsel %vm1055, %v1013, %v1083
        %v1112 = vsel %vm1056, %v1015, %v1084
        %v1113 = vsel %vm1057, %v912, %v1085
        %v1114 = vsel %vm1058, %v914, %v1086
        %v1115 = vsel %vm1059, %v1019, %v1087
        %v1116 = vsel %vm1060, %v1021, %v1088
        %v1117 = vsel %vm1061, %v918, %v1089
        %v1118 = vsel %vm1062, %v920, %v1090
        %v1119 = vsel %vm1063, %v1025, %v1091
        %v1120 = vsel %vm1064, %v1027, %v1092
        %v1121 = vsel %vm1065, %v924, %v1093
        %v1122 = vsel %vm1066, %v926, %v1094
        %v1123 = vsel %vm1067, %v1031, %v1095
        %v1124 = vsel %vm1068, %v1033, %v1096
        %v1125 = vsel %vm1069, %v930, %v1097
        %v1126 = vsel %vm1070, %v932, %v1098
        %v1127 = vsel %vm1071, %v1037, %v1099
        %v1128 = vsel %vm1072, %v1039, %v1100
        %v1129 = vsel %vm1073, %v936, %v1101
        %v1130 = vsel %vm1074, %v938, %v1102
        %v1131 = vsel %vm1075, %v1043, %v1103
        %v1132 = vsel %vm1076, %v1045, %v1104
        %v1133 = vsel %vm1077, %v942, %v1105
        %v1134 = vsel %vm1078, %v944, %v1106
        %v1135 = vsel %vm1079, %v1049, %v1107
        %v1136 = vsel %vm1080, %v1051, %v1108
        %v1137 = vld [vmem:[#allocation9] sm:$0xff]
        %v1138 = vld [vmem:[#allocation9 + $0x8] sm:$0xff]
        %v1139 = vld [vmem:[#allocation9 + $0x10] sm:$0xff]
        %v1140 = vld [vmem:[#allocation9 + $0x18] sm:$0xff]
        %v1141 = vld [vmem:[#allocation9 + $0x20] sm:$0xff]
        %v1142 = vld [vmem:[#allocation9 + $0x28] sm:$0xff]
        %v1143 = vld [vmem:[#allocation9 + $0x30] sm:$0xff]
        %v1144 = vld [vmem:[#allocation9 + $0x38] sm:$0xff]
        %v1145 = vld [vmem:[#allocation9 + $0x40] sm:$0xff]
        %v1146 = vld [vmem:[#allocation9 + $0x48] sm:$0xff]
        %v1147 = vld [vmem:[#allocation9 + $0x50] sm:$0xff]
        %v1148 = vld [vmem:[#allocation9 + $0x58] sm:$0xff]
        %v1149 = vld [vmem:[#allocation9 + $0x60] sm:$0xff]
        %v1150 = vld [vmem:[#allocation9 + $0x68] sm:$0xff]
        %v1151 = vld [vmem:[#allocation9 + $0x70] sm:$0xff]
        %v1152 = vld [vmem:[#allocation9 + $0x78] sm:$0xff]
        %v1153 = vld [vmem:[#allocation9 + $0x80] sm:$0xff]
        %v1154 = vld [vmem:[#allocation9 + $0x88] sm:$0xff]
        %v1155 = vld [vmem:[#allocation9 + $0x90] sm:$0xff]
        %v1156 = vld [vmem:[#allocation9 + $0x98] sm:$0xff]
        %v1157 = vld [vmem:[#allocation9 + $0xa0] sm:$0xff]
        %v1158 = vld [vmem:[#allocation9 + $0xa8] sm:$0xff]
        %v1159 = vld [vmem:[#allocation9 + $0xb0] sm:$0xff]
        %v1160 = vld [vmem:[#allocation9 + $0xb8] sm:$0xff]
        %v1161 = vld [vmem:[#allocation9 + $0xc0] sm:$0xff]
        %v1162 = vld [vmem:[#allocation9 + $0xc8] sm:$0xff]
        %v1163 = vld [vmem:[#allocation9 + $0xd0] sm:$0xff]
        %v1164 = vld [vmem:[#allocation9 + $0xd8] sm:$0xff]
        %v1165 = vld [vmem:[#allocation9 + $0xe0] sm:$0xff]
        %v1166 = vld [vmem:[#allocation9 + $0xe8] sm:$0xff]
        %v1167 = vld [vmem:[#allocation9 + $0xf0] sm:$0xff]
        %v1168 = vld [vmem:[#allocation9 + $0xf8] sm:$0xff]
        %v1169 = vld [vmem:[#allocation10] sm:$0x3]
        %v1170 = vld [vmem:[#allocation12] sm:$0xff]
        %v1171 = vld [vmem:[#allocation12 + $0x8] sm:$0xff]
        %v1172 = vld [vmem:[#allocation12 + $0x10] sm:$0xff]
        %v1173 = vld [vmem:[#allocation12 + $0x18] sm:$0xff]
        %v1174 = vld [vmem:[#allocation12 + $0x20] sm:$0xff]
        %v1175 = vld [vmem:[#allocation12 + $0x28] sm:$0xff]
        %v1176 = vld [vmem:[#allocation12 + $0x30] sm:$0xff]
        %v1177 = vld [vmem:[#allocation12 + $0x38] sm:$0xff]
        %v1178 = vld [vmem:[#allocation12 + $0x40] sm:$0xff]
        %v1179 = vld [vmem:[#allocation12 + $0x48] sm:$0xff]
        %v1180 = vld [vmem:[#allocation12 + $0x50] sm:$0xff]
        %v1181 = vld [vmem:[#allocation12 + $0x58] sm:$0xff]
        %v1182 = vld [vmem:[#allocation12 + $0x60] sm:$0xff]
        %v1183 = vld [vmem:[#allocation12 + $0x68] sm:$0xff]
        %v1184 = vld [vmem:[#allocation12 + $0x70] sm:$0xff]
        %v1185 = vld [vmem:[#allocation12 + $0x78] sm:$0xff]
        %v1186 = vld [vmem:[#allocation12 + $0x80] sm:$0xff]
        %v1187 = vld [vmem:[#allocation12 + $0x88] sm:$0xff]
        %v1188 = vld [vmem:[#allocation12 + $0x90] sm:$0xff]
        %v1189 = vld [vmem:[#allocation12 + $0x98] sm:$0xff]
        %v1190 = vld [vmem:[#allocation12 + $0xa0] sm:$0xff]
        %v1191 = vld [vmem:[#allocation12 + $0xa8] sm:$0xff]
        %v1192 = vld [vmem:[#allocation12 + $0xb0] sm:$0xff]
        %v1193 = vld [vmem:[#allocation12 + $0xb8] sm:$0xff]
        %v1194 = vld [vmem:[#allocation12 + $0xc0] sm:$0xff]
        %v1195 = vld [vmem:[#allocation12 + $0xc8] sm:$0xff]
        %v1196 = vld [vmem:[#allocation12 + $0xd0] sm:$0xff]
        %v1197 = vld [vmem:[#allocation12 + $0xd8] sm:$0xff]
        %v1198 = vld [vmem:[#allocation12 + $0xe0] sm:$0xff]
        %v1199 = vld [vmem:[#allocation12 + $0xe8] sm:$0xff]
        %v1200 = vld [vmem:[#allocation12 + $0xf0] sm:$0xff]
        %v1201 = vld [vmem:[#allocation12 + $0xf8] sm:$0xff]
        %v1202 = vld [vmem:[#allocation12 + $0x100] sm:$0xff]
        %v1203 = vld [vmem:[#allocation12 + $0x108] sm:$0xff]
        %v1204 = vld [vmem:[#allocation12 + $0x110] sm:$0xff]
        %v1205 = vld [vmem:[#allocation12 + $0x118] sm:$0xff]
        %v1206 = vld [vmem:[#allocation12 + $0x120] sm:$0xff]
        %v1207 = vld [vmem:[#allocation12 + $0x128] sm:$0xff]
        %v1208 = vld [vmem:[#allocation12 + $0x130] sm:$0xff]
        %v1209 = vld [vmem:[#allocation12 + $0x138] sm:$0xff]
        %v1210 = vld [vmem:[#allocation12 + $0x140] sm:$0xff]
        %v1211 = vld [vmem:[#allocation12 + $0x148] sm:$0xff]
        %v1212 = vld [vmem:[#allocation12 + $0x150] sm:$0xff]
        %v1213 = vld [vmem:[#allocation12 + $0x158] sm:$0xff]
        %v1214 = vld [vmem:[#allocation12 + $0x160] sm:$0xff]
        %v1215 = vld [vmem:[#allocation12 + $0x168] sm:$0xff]
        %v1216 = vld [vmem:[#allocation12 + $0x170] sm:$0xff]
        %v1217 = vld [vmem:[#allocation12 + $0x178] sm:$0xff]
        %v1218 = vld [vmem:[#allocation12 + $0x180] sm:$0xff]
        %v1219 = vld [vmem:[#allocation12 + $0x188] sm:$0xff]
        %v1220 = vld [vmem:[#allocation12 + $0x190] sm:$0xff]
        %v1221 = vld [vmem:[#allocation12 + $0x198] sm:$0xff]
        %v1222 = vld [vmem:[#allocation12 + $0x1a0] sm:$0xff]
        %v1223 = vld [vmem:[#allocation12 + $0x1a8] sm:$0xff]
        %v1224 = vld [vmem:[#allocation12 + $0x1b0] sm:$0xff]
        %v1225 = vld [vmem:[#allocation12 + $0x1b8] sm:$0xff]
        %v1226 = vld [vmem:[#allocation12 + $0x1c0] sm:$0xff]
        %v1227 = vld [vmem:[#allocation12 + $0x1c8] sm:$0xff]
        %v1228 = vld [vmem:[#allocation12 + $0x1d0] sm:$0xff]
        %v1229 = vld [vmem:[#allocation12 + $0x1d8] sm:$0xff]
        %v1230 = vld [vmem:[#allocation12 + $0x1e0] sm:$0xff]
        %v1231 = vld [vmem:[#allocation12 + $0x1e8] sm:$0xff]
        %v1232 = vld [vmem:[#allocation12 + $0x1f0] sm:$0xff]
        %v1233 = vld [vmem:[#allocation12 + $0x1f8] sm:$0xff]
        %v1234 = vld [vmem:[#allocation13] sm:$0x3]
        %v1236 = vlaneseq
        %v1237 = vshrl.u32 %v1236, 7
        %v1238 = vsub.s32 0, %v1237
        %v1239 = vrot.slane %v1169, %v1238
        %v1240 = vlaneseq
        %v1241 = vshrl.u32 %v1240, 7
        %v1242 = vsub.s32 1, %v1241
        %v1243 = vrot.slane %v1169, %v1242
        %1246 = vmatprep.subr.mxu0 %v1138
        %1247 = vmatpush1.msra.mxu0 %v1137
        %1248 = vmatprep.subr.mxu0 %v1140
        %1249 = vmatpush1.msra.mxu0 %v1139
        %1250 = vmatprep.subr.mxu0 %v1142
        %1251 = vmatpush1.msra.mxu0 %v1141
        %1252 = vmatprep.subr.mxu0 %v1144
        %1253 = vmatpush1.msra.mxu0 %v1143
        %1254 = vmatprep.subr.mxu0 %v1146
        %1255 = vmatpush1.msra.mxu0 %v1145
        %1256 = vmatprep.subr.mxu0 %v1148
        %1257 = vmatpush1.msra.mxu0 %v1147
        %1258 = vmatprep.subr.mxu0 %v1150
        %1259 = vmatpush1.msra.mxu0 %v1149
        %1260 = vmatprep.subr.mxu0 %v1152
        %1261 = vmatpush1.msra.mxu0 %v1151
        %1262 = vmatprep.subr.mxu0 %v1154
        %1263 = vmatpush1.msra.mxu0 %v1153
        %1264 = vmatprep.subr.mxu0 %v1156
        %1265 = vmatpush1.msra.mxu0 %v1155
        %1266 = vmatprep.subr.mxu0 %v1158
        %1267 = vmatpush1.msra.mxu0 %v1157
        %1268 = vmatprep.subr.mxu0 %v1160
        %1269 = vmatpush1.msra.mxu0 %v1159
        %1270 = vmatprep.subr.mxu0 %v1162
        %1271 = vmatpush1.msra.mxu0 %v1161
        %1272 = vmatprep.subr.mxu0 %v1164
        %1273 = vmatpush1.msra.mxu0 %v1163
        %1274 = vmatprep.subr.mxu0 %v1166
        %1275 = vmatpush1.msra.mxu0 %v1165
        %1276 = vmatprep.subr.mxu0 %v1168
        %1277 = vmatpush1.msra.mxu0 %v1167
        %1278 = vmatprep.subr.mxu0 0.0
        %1279 = vmatpush1.msra.mxu0 0.0
        %1280 = vmatprep.subr.mxu0 0.0
        %1281 = vmatpush1.msra.mxu0 0.0
        %1282 = vmatprep.subr.mxu0 0.0
        %1283 = vmatpush1.msra.mxu0 0.0
        %1284 = vmatprep.subr.mxu0 0.0
        %1285 = vmatpush1.msra.mxu0 0.0
        %1286 = vmatprep.subr.mxu0 0.0
        %1287 = vmatpush1.msra.mxu0 0.0
        %1288 = vmatprep.subr.mxu0 0.0
        %1289 = vmatpush1.msra.mxu0 0.0
        %1290 = vmatprep.subr.mxu0 0.0
        %1291 = vmatpush1.msra.mxu0 0.0
        %1292 = vmatprep.subr.mxu0 0.0
        %1293 = vmatpush1.msra.mxu0 0.0
        %1294 = vmatprep.subr.mxu0 0.0
        %1295 = vmatpush1.msra.mxu0 0.0
        %1296 = vmatprep.subr.mxu0 0.0
        %1297 = vmatpush1.msra.mxu0 0.0
        %1298 = vmatprep.subr.mxu0 0.0
        %1299 = vmatpush1.msra.mxu0 0.0
        %1300 = vmatprep.subr.mxu0 0.0
        %1301 = vmatpush1.msra.mxu0 0.0
        %1302 = vmatprep.subr.mxu0 0.0
        %1303 = vmatpush1.msra.mxu0 0.0
        %1304 = vmatprep.subr.mxu0 0.0
        %1305 = vmatpush1.msra.mxu0 0.0
        %1306 = vmatprep.subr.mxu0 0.0
        %1307 = vmatpush1.msra.mxu0 0.0
        %1308 = vmatprep.subr.mxu0 0.0
        %1309 = vmatpush1.msra.mxu0 0.0
        %1310 = vmatprep.mubr.f32.mxu0 0.0
        %1311 = vmatmul.mubr.f32.gmra.mrb[0].mxu0 %v1109
        %v1312 = vpop.f32.mrb[0].mxu0
        %v1313 = vadd.f32 %v1239, %v1312
        %v1314 = vpop.f32.mrb[0].mxu0
        %v1315 = vadd.f32 %v1243, %v1314
        %1316 = vmatprep.mubr.f32.mxu0 0.0
        %1317 = vmatmul.mubr.f32.gmra.mrb[0].mxu0 %v1113
        %v1318 = vpop.f32.mrb[0].mxu0
        %v1319 = vadd.f32 %v1239, %v1318
        %v1320 = vpop.f32.mrb[0].mxu0
        %v1321 = vadd.f32 %v1243, %v1320
        %1322 = vmatprep.mubr.f32.mxu0 0.0
        %1323 = vmatmul.mubr.f32.gmra.mrb[0].mxu0 %v1117
        %v1324 = vpop.f32.mrb[0].mxu0
        %v1325 = vadd.f32 %v1239, %v1324
        %v1326 = vpop.f32.mrb[0].mxu0
        %v1327 = vadd.f32 %v1243, %v1326
        %1328 = vmatprep.mubr.f32.mxu0 0.0
        %1329 = vmatmul.mubr.f32.gmra.mrb[0].mxu0 %v1121
        %v1330 = vpop.f32.mrb[0].mxu0
        %v1331 = vadd.f32 %v1239, %v1330
        %v1332 = vpop.f32.mrb[0].mxu0
        %v1333 = vadd.f32 %v1243, %v1332
        %1334 = vmatprep.mubr.f32.mxu0 0.0
        %1335 = vmatmul.mubr.f32.gmra.mrb[0].mxu0 %v1125
        %v1336 = vpop.f32.mrb[0].mxu0
        %v1337 = vadd.f32 %v1239, %v1336
        %v1338 = vpop.f32.mrb[0].mxu0
        %v1339 = vadd.f32 %v1243, %v1338
        %1340 = vmatprep.mubr.f32.mxu0 0.0
        %1341 = vmatmul.mubr.f32.gmra.mrb[0].mxu0 %v1129
        %v1342 = vpop.f32.mrb[0].mxu0
        %v1343 = vadd.f32 %v1239, %v1342
        %v1344 = vpop.f32.mrb[0].mxu0
        %v1345 = vadd.f32 %v1243, %v1344
        %1346 = vmatprep.mubr.f32.mxu0 0.0
        %1347 = vmatmul.mubr.f32.gmra.mrb[0].mxu0 %v1133
        %v1348 = vpop.f32.mrb[0].mxu0
        %v1349 = vadd.f32 %v1239, %v1348
        %v1350 = vpop.f32.mrb[0].mxu0
        %v1351 = vadd.f32 %v1243, %v1350
        %1352 = vdwg.mxu0
        %vm1353 = vcmp.ge.f32.partialorder %v1313, 0.0
        %vm1354 = vcmp.ge.f32.partialorder %v1315, 0.0
        %vm1355 = vcmp.ge.f32.partialorder %v1319, 0.0
        %vm1356 = vcmp.ge.f32.partialorder %v1321, 0.0
        %vm1357 = vcmp.ge.f32.partialorder %v1325, 0.0
        %vm1358 = vcmp.ge.f32.partialorder %v1327, 0.0
        %vm1359 = vcmp.ge.f32.partialorder %v1331, 0.0
        %vm1360 = vcmp.ge.f32.partialorder %v1333, 0.0
        %vm1361 = vcmp.ge.f32.partialorder %v1337, 0.0
        %vm1362 = vcmp.ge.f32.partialorder %v1339, 0.0
        %vm1363 = vcmp.ge.f32.partialorder %v1343, 0.0
        %vm1364 = vcmp.ge.f32.partialorder %v1345, 0.0
        %vm1365 = vcmp.ge.f32.partialorder %v1349, 0.0
        %vm1366 = vcmp.ge.f32.partialorder %v1351, 0.0
        %v1367 = vmul.f32 %v1313, 0.01
        %v1368 = vmul.f32 %v1315, 0.01
        %v1369 = vmul.f32 %v1319, 0.01
        %v1370 = vmul.f32 %v1321, 0.01
        %v1371 = vmul.f32 %v1325, 0.01
        %v1372 = vmul.f32 %v1327, 0.01
        %v1373 = vmul.f32 %v1331, 0.01
        %v1374 = vmul.f32 %v1333, 0.01
        %v1375 = vmul.f32 %v1337, 0.01
        %v1376 = vmul.f32 %v1339, 0.01
        %v1377 = vmul.f32 %v1343, 0.01
        %v1378 = vmul.f32 %v1345, 0.01
        %v1379 = vmul.f32 %v1349, 0.01
        %v1380 = vmul.f32 %v1351, 0.01
        %v1381 = vsel %vm1353, %v1313, %v1367
        %v1382 = vsel %vm1354, %v1315, %v1368
        %v1383 = vsel %vm1355, %v1319, %v1369
        %v1384 = vsel %vm1356, %v1321, %v1370
        %v1385 = vsel %vm1357, %v1325, %v1371
        %v1386 = vsel %vm1358, %v1327, %v1372
        %v1387 = vsel %vm1359, %v1331, %v1373
        %v1388 = vsel %vm1360, %v1333, %v1374
        %v1389 = vsel %vm1361, %v1337, %v1375
        %v1390 = vsel %vm1362, %v1339, %v1376
        %v1391 = vsel %vm1363, %v1343, %v1377
        %v1392 = vsel %vm1364, %v1345, %v1378
        %v1393 = vsel %vm1365, %v1349, %v1379
        %v1394 = vsel %vm1366, %v1351, %v1380
        %v1396 = vlaneseq
        %v1397 = vshrl.u32 %v1396, 7
        %v1398 = vsub.s32 0, %v1397
        %v1399 = vrot.slane %v1234, %v1398
        %v1400 = vlaneseq
        %v1401 = vshrl.u32 %v1400, 7
        %v1402 = vsub.s32 1, %v1401
        %v1403 = vrot.slane %v1234, %v1402
        %1406 = vmatprep.subr.mxu0 %v1171
        %1407 = vmatpush1.msra.mxu0 %v1170
        %1408 = vmatprep.subr.mxu0 %v1173
        %1409 = vmatpush1.msra.mxu0 %v1172
        %1410 = vmatprep.subr.mxu0 %v1175
        %1411 = vmatpush1.msra.mxu0 %v1174
        %1412 = vmatprep.subr.mxu0 %v1177
        %1413 = vmatpush1.msra.mxu0 %v1176
        %1414 = vmatprep.subr.mxu0 %v1179
        %1415 = vmatpush1.msra.mxu0 %v1178
        %1416 = vmatprep.subr.mxu0 %v1181
        %1417 = vmatpush1.msra.mxu0 %v1180
        %1418 = vmatprep.subr.mxu0 %v1183
        %1419 = vmatpush1.msra.mxu0 %v1182
        %1420 = vmatprep.subr.mxu0 %v1185
        %1421 = vmatpush1.msra.mxu0 %v1184
        %1422 = vmatprep.subr.mxu0 %v1187
        %1423 = vmatpush1.msra.mxu0 %v1186
        %1424 = vmatprep.subr.mxu0 %v1189
        %1425 = vmatpush1.msra.mxu0 %v1188
        %1426 = vmatprep.subr.mxu0 %v1191
        %1427 = vmatpush1.msra.mxu0 %v1190
        %1428 = vmatprep.subr.mxu0 %v1193
        %1429 = vmatpush1.msra.mxu0 %v1192
        %1430 = vmatprep.subr.mxu0 %v1195
        %1431 = vmatpush1.msra.mxu0 %v1194
        %1432 = vmatprep.subr.mxu0 %v1197
        %1433 = vmatpush1.msra.mxu0 %v1196
        %1434 = vmatprep.subr.mxu0 %v1199
        %1435 = vmatpush1.msra.mxu0 %v1198
        %1436 = vmatprep.subr.mxu0 %v1201
        %1437 = vmatpush1.msra.mxu0 %v1200
        %1438 = vmatprep.subr.mxu0 %v1203
        %1439 = vmatpush1.msra.mxu0 %v1202
        %1440 = vmatprep.subr.mxu0 %v1205
        %1441 = vmatpush1.msra.mxu0 %v1204
        %1442 = vmatprep.subr.mxu0 %v1207
        %1443 = vmatpush1.msra.mxu0 %v1206
        %1444 = vmatprep.subr.mxu0 %v1209
        %1445 = vmatpush1.msra.mxu0 %v1208
        %1446 = vmatprep.subr.mxu0 %v1211
        %1447 = vmatpush1.msra.mxu0 %v1210
        %1448 = vmatprep.subr.mxu0 %v1213
        %1449 = vmatpush1.msra.mxu0 %v1212
        %1450 = vmatprep.subr.mxu0 %v1215
        %1451 = vmatpush1.msra.mxu0 %v1214
        %1452 = vmatprep.subr.mxu0 %v1217
        %1453 = vmatpush1.msra.mxu0 %v1216
        %1454 = vmatprep.subr.mxu0 %v1219
        %1455 = vmatpush1.msra.mxu0 %v1218
        %1456 = vmatprep.subr.mxu0 %v1221
        %1457 = vmatpush1.msra.mxu0 %v1220
        %1458 = vmatprep.subr.mxu0 %v1223
        %1459 = vmatpush1.msra.mxu0 %v1222
        %1460 = vmatprep.subr.mxu0 %v1225
        %1461 = vmatpush1.msra.mxu0 %v1224
        %1462 = vmatprep.subr.mxu0 %v1227
        %1463 = vmatpush1.msra.mxu0 %v1226
        %1464 = vmatprep.subr.mxu0 %v1229
        %1465 = vmatpush1.msra.mxu0 %v1228
        %1466 = vmatprep.subr.mxu0 %v1231
        %1467 = vmatpush1.msra.mxu0 %v1230
        %1468 = vmatprep.subr.mxu0 %v1233
        %1469 = vmatpush1.msra.mxu0 %v1232
        %1470 = vmatprep.mubr.f32.mxu0 %v1382
        %1471 = vmatmul.mubr.f32.gmra.mrb[0].mxu0 %v1381
        %v1472 = vpop.f32.mrb[0].mxu0
        %v1473 = vadd.f32 %v1399, %v1472
        %v1474 = vpop.f32.mrb[0].mxu0
        %v1475 = vadd.f32 %v1403, %v1474
        %1476 = vmatprep.mubr.f32.mxu0 %v1384
        %1477 = vmatmul.mubr.f32.gmra.mrb[0].mxu0 %v1383
        %v1478 = vpop.f32.mrb[0].mxu0
        %v1479 = vadd.f32 %v1399, %v1478
        %v1480 = vpop.f32.mrb[0].mxu0
        %v1481 = vadd.f32 %v1403, %v1480
        %1482 = vmatprep.mubr.f32.mxu0 %v1386
        %1483 = vmatmul.mubr.f32.gmra.mrb[0].mxu0 %v1385
        %v1484 = vpop.f32.mrb[0].mxu0
        %v1485 = vadd.f32 %v1399, %v1484
        %v1486 = vpop.f32.mrb[0].mxu0
        %v1487 = vadd.f32 %v1403, %v1486
        %1488 = vmatprep.mubr.f32.mxu0 %v1388
        %1489 = vmatmul.mubr.f32.gmra.mrb[0].mxu0 %v1387
        %v1490 = vpop.f32.mrb[0].mxu0
        %v1491 = vadd.f32 %v1399, %v1490
        %v1492 = vpop.f32.mrb[0].mxu0
        %v1493 = vadd.f32 %v1403, %v1492
        %1494 = vmatprep.mubr.f32.mxu0 %v1390
        %1495 = vmatmul.mubr.f32.gmra.mrb[0].mxu0 %v1389
        %v1496 = vpop.f32.mrb[0].mxu0
        %v1497 = vadd.f32 %v1399, %v1496
        %v1498 = vpop.f32.mrb[0].mxu0
        %v1499 = vadd.f32 %v1403, %v1498
        %1500 = vmatprep.mubr.f32.mxu0 %v1392
        %1501 = vmatmul.mubr.f32.gmra.mrb[0].mxu0 %v1391
        %v1502 = vpop.f32.mrb[0].mxu0
        %v1503 = vadd.f32 %v1399, %v1502
        %v1504 = vpop.f32.mrb[0].mxu0
        %v1505 = vadd.f32 %v1403, %v1504
        %1506 = vmatprep.mubr.f32.mxu0 %v1394
        %1507 = vmatmul.mubr.f32.gmra.mrb[0].mxu0 %v1393
        %v1508 = vpop.f32.mrb[0].mxu0
        %v1509 = vadd.f32 %v1399, %v1508
        %v1510 = vpop.f32.mrb[0].mxu0
        %v1511 = vadd.f32 %v1403, %v1510
        %1512 = vdwg.mxu0
        %vm1513 = vcmp.ge.f32.partialorder %v1473, 0.0
        %vm1514 = vcmp.ge.f32.partialorder %v1475, 0.0
        %vm1515 = vcmp.ge.f32.partialorder %v1479, 0.0
        %vm1516 = vcmp.ge.f32.partialorder %v1481, 0.0
        %vm1517 = vcmp.ge.f32.partialorder %v1485, 0.0
        %vm1518 = vcmp.ge.f32.partialorder %v1487, 0.0
        %vm1519 = vcmp.ge.f32.partialorder %v1491, 0.0
        %vm1520 = vcmp.ge.f32.partialorder %v1493, 0.0
        %vm1521 = vcmp.ge.f32.partialorder %v1497, 0.0
        %vm1522 = vcmp.ge.f32.partialorder %v1499, 0.0
        %vm1523 = vcmp.ge.f32.partialorder %v1503, 0.0
        %vm1524 = vcmp.ge.f32.partialorder %v1505, 0.0
        %vm1525 = vcmp.ge.f32.partialorder %v1509, 0.0
        %vm1526 = vcmp.ge.f32.partialorder %v1511, 0.0
        %v1527 = vmul.f32 %v1473, 0.01
        %v1528 = vmul.f32 %v1475, 0.01
        %v1529 = vmul.f32 %v1479, 0.01
        %v1530 = vmul.f32 %v1481, 0.01
        %v1531 = vmul.f32 %v1485, 0.01
        %v1532 = vmul.f32 %v1487, 0.01
        %v1533 = vmul.f32 %v1491, 0.01
        %v1534 = vmul.f32 %v1493, 0.01
        %v1535 = vmul.f32 %v1497, 0.01
        %v1536 = vmul.f32 %v1499, 0.01
        %v1537 = vmul.f32 %v1503, 0.01
        %v1538 = vmul.f32 %v1505, 0.01
        %v1539 = vmul.f32 %v1509, 0.01
        %v1540 = vmul.f32 %v1511, 0.01
        %v1541 = vsel %vm1513, %v1473, %v1527
        %v1542 = vsel %vm1514, %v1475, %v1528
        %v1543 = vsel %vm1515, %v1479, %v1529
        %v1544 = vsel %vm1516, %v1481, %v1530
        %v1545 = vsel %vm1517, %v1485, %v1531
        %v1546 = vsel %vm1518, %v1487, %v1532
        %v1547 = vsel %vm1519, %v1491, %v1533
        %v1548 = vsel %vm1520, %v1493, %v1534
        %v1549 = vsel %vm1521, %v1497, %v1535
        %v1550 = vsel %vm1522, %v1499, %v1536
        %v1551 = vsel %vm1523, %v1503, %v1537
        %v1552 = vsel %vm1524, %v1505, %v1538
        %v1553 = vsel %vm1525, %v1509, %v1539
        %v1554 = vsel %vm1526, %v1511, %v1540
        %1555 = vst [vmem:[%s448] sm:$0xff] %v1541
        %1556 = vst [vmem:[%s448 + $0x8] sm:$0xff] %v1542
        %1557 = vst [vmem:[%s448 + $0x40] sm:$0xff] %v1543
        %1558 = vst [vmem:[%s448 + $0x48] sm:$0xff] %v1544
        %1559 = vst [vmem:[%s448 + $0x80] sm:$0xff] %v1545
        %1560 = vst [vmem:[%s448 + $0x88] sm:$0xff] %v1546
        %1561 = vst [vmem:[%s448 + $0xc0] sm:$0xff] %v1547
        %1562 = vst [vmem:[%s448 + $0xc8] sm:$0xff] %v1548
        %1563 = vst [vmem:[%s448 + $0x100] sm:$0xff] %v1549
        %1564 = vst [vmem:[%s448 + $0x108] sm:$0xff] %v1550
        %1565 = vst [vmem:[%s448 + $0x140] sm:$0xff] %v1551
        %1566 = vst [vmem:[%s448 + $0x148] sm:$0xff] %v1552
        %1567 = vst [vmem:[%s448 + $0x180] sm:$0xff] %v1553
        %1568 = vst [vmem:[%s448 + $0x188] sm:$0xff] %v1554
        %1569 = vmatprep.subr.mxu0 %v1138
        %1570 = vmatpush1.msra.mxu0 %v1137
        %1571 = vmatprep.subr.mxu0 %v1140
        %1572 = vmatpush1.msra.mxu0 %v1139
        %1573 = vmatprep.subr.mxu0 %v1142
        %1574 = vmatpush1.msra.mxu0 %v1141
        %1575 = vmatprep.subr.mxu0 %v1144
        %1576 = vmatpush1.msra.mxu0 %v1143
        %1577 = vmatprep.subr.mxu0 %v1146
        %1578 = vmatpush1.msra.mxu0 %v1145
        %1579 = vmatprep.subr.mxu0 %v1148
        %1580 = vmatpush1.msra.mxu0 %v1147
        %1581 = vmatprep.subr.mxu0 %v1150
        %1582 = vmatpush1.msra.mxu0 %v1149
        %1583 = vmatprep.subr.mxu0 %v1152
        %1584 = vmatpush1.msra.mxu0 %v1151
        %1585 = vmatprep.subr.mxu0 %v1154
        %1586 = vmatpush1.msra.mxu0 %v1153
        %1587 = vmatprep.subr.mxu0 %v1156
        %1588 = vmatpush1.msra.mxu0 %v1155
        %1589 = vmatprep.subr.mxu0 %v1158
        %1590 = vmatpush1.msra.mxu0 %v1157
        %1591 = vmatprep.subr.mxu0 %v1160
        %1592 = vmatpush1.msra.mxu0 %v1159
        %1593 = vmatprep.subr.mxu0 %v1162
        %1594 = vmatpush1.msra.mxu0 %v1161
        %1595 = vmatprep.subr.mxu0 %v1164
        %1596 = vmatpush1.msra.mxu0 %v1163
        %1597 = vmatprep.subr.mxu0 %v1166
        %1598 = vmatpush1.msra.mxu0 %v1165
        %1599 = vmatprep.subr.mxu0 %v1168
        %1600 = vmatpush1.msra.mxu0 %v1167
        %1601 = vmatprep.subr.mxu0 0.0
        %1602 = vmatpush1.msra.mxu0 0.0
        %1603 = vmatprep.subr.mxu0 0.0
        %1604 = vmatpush1.msra.mxu0 0.0
        %1605 = vmatprep.subr.mxu0 0.0
        %1606 = vmatpush1.msra.mxu0 0.0
        %1607 = vmatprep.subr.mxu0 0.0
        %1608 = vmatpush1.msra.mxu0 0.0
        %1609 = vmatprep.subr.mxu0 0.0
        %1610 = vmatpush1.msra.mxu0 0.0
        %1611 = vmatprep.subr.mxu0 0.0
        %1612 = vmatpush1.msra.mxu0 0.0
        %1613 = vmatprep.subr.mxu0 0.0
        %1614 = vmatpush1.msra.mxu0 0.0
        %1615 = vmatprep.subr.mxu0 0.0
        %1616 = vmatpush1.msra.mxu0 0.0
        %1617 = vmatprep.subr.mxu0 0.0
        %1618 = vmatpush1.msra.mxu0 0.0
        %1619 = vmatprep.subr.mxu0 0.0
        %1620 = vmatpush1.msra.mxu0 0.0
        %1621 = vmatprep.subr.mxu0 0.0
        %1622 = vmatpush1.msra.mxu0 0.0
        %1623 = vmatprep.subr.mxu0 0.0
        %1624 = vmatpush1.msra.mxu0 0.0
        %1625 = vmatprep.subr.mxu0 0.0
        %1626 = vmatpush1.msra.mxu0 0.0
        %1627 = vmatprep.subr.mxu0 0.0
        %1628 = vmatpush1.msra.mxu0 0.0
        %1629 = vmatprep.subr.mxu0 0.0
        %1630 = vmatpush1.msra.mxu0 0.0
        %1631 = vmatprep.subr.mxu0 0.0
        %1632 = vmatpush1.msra.mxu0 0.0
        %1633 = vmatprep.mubr.f32.mxu0 0.0
        %1634 = vmatmul.mubr.f32.gmra.mrb[0].mxu0 %v1110
        %v1635 = vpop.f32.mrb[0].mxu0
        %v1636 = vadd.f32 %v1239, %v1635
        %v1637 = vpop.f32.mrb[0].mxu0
        %v1638 = vadd.f32 %v1243, %v1637
        %1639 = vmatprep.mubr.f32.mxu0 0.0
        %1640 = vmatmul.mubr.f32.gmra.mrb[0].mxu0 %v1114
        %v1641 = vpop.f32.mrb[0].mxu0
        %v1642 = vadd.f32 %v1239, %v1641
        %v1643 = vpop.f32.mrb[0].mxu0
        %v1644 = vadd.f32 %v1243, %v1643
        %1645 = vmatprep.mubr.f32.mxu0 0.0
        %1646 = vmatmul.mubr.f32.gmra.mrb[0].mxu0 %v1118
        %v1647 = vpop.f32.mrb[0].mxu0
        %v1648 = vadd.f32 %v1239, %v1647
        %v1649 = vpop.f32.mrb[0].mxu0
        %v1650 = vadd.f32 %v1243, %v1649
        %1651 = vmatprep.mubr.f32.mxu0 0.0
        %1652 = vmatmul.mubr.f32.gmra.mrb[0].mxu0 %v1122
        %v1653 = vpop.f32.mrb[0].mxu0
        %v1654 = vadd.f32 %v1239, %v1653
        %v1655 = vpop.f32.mrb[0].mxu0
        %v1656 = vadd.f32 %v1243, %v1655
        %1657 = vmatprep.mubr.f32.mxu0 0.0
        %1658 = vmatmul.mubr.f32.gmra.mrb[0].mxu0 %v1126
        %v1659 = vpop.f32.mrb[0].mxu0
        %v1660 = vadd.f32 %v1239, %v1659
        %v1661 = vpop.f32.mrb[0].mxu0
        %v1662 = vadd.f32 %v1243, %v1661
        %1663 = vmatprep.mubr.f32.mxu0 0.0
        %1664 = vmatmul.mubr.f32.gmra.mrb[0].mxu0 %v1130
        %v1665 = vpop.f32.mrb[0].mxu0
        %v1666 = vadd.f32 %v1239, %v1665
        %v1667 = vpop.f32.mrb[0].mxu0
        %v1668 = vadd.f32 %v1243, %v1667
        %1669 = vmatprep.mubr.f32.mxu0 0.0
        %1670 = vmatmul.mubr.f32.gmra.mrb[0].mxu0 %v1134
        %v1671 = vpop.f32.mrb[0].mxu0
        %v1672 = vadd.f32 %v1239, %v1671
        %v1673 = vpop.f32.mrb[0].mxu0
        %v1674 = vadd.f32 %v1243, %v1673
        %1675 = vdwg.mxu0
        %vm1676 = vcmp.ge.f32.partialorder %v1636, 0.0
        %vm1677 = vcmp.ge.f32.partialorder %v1638, 0.0
        %vm1678 = vcmp.ge.f32.partialorder %v1642, 0.0
        %vm1679 = vcmp.ge.f32.partialorder %v1644, 0.0
        %vm1680 = vcmp.ge.f32.partialorder %v1648, 0.0
        %vm1681 = vcmp.ge.f32.partialorder %v1650, 0.0
        %vm1682 = vcmp.ge.f32.partialorder %v1654, 0.0
        %vm1683 = vcmp.ge.f32.partialorder %v1656, 0.0
        %vm1684 = vcmp.ge.f32.partialorder %v1660, 0.0
        %vm1685 = vcmp.ge.f32.partialorder %v1662, 0.0
        %vm1686 = vcmp.ge.f32.partialorder %v1666, 0.0
        %vm1687 = vcmp.ge.f32.partialorder %v1668, 0.0
        %vm1688 = vcmp.ge.f32.partialorder %v1672, 0.0
        %vm1689 = vcmp.ge.f32.partialorder %v1674, 0.0
        %v1690 = vmul.f32 %v1636, 0.01
        %v1691 = vmul.f32 %v1638, 0.01
        %v1692 = vmul.f32 %v1642, 0.01
        %v1693 = vmul.f32 %v1644, 0.01
        %v1694 = vmul.f32 %v1648, 0.01
        %v1695 = vmul.f32 %v1650, 0.01
        %v1696 = vmul.f32 %v1654, 0.01
        %v1697 = vmul.f32 %v1656, 0.01
        %v1698 = vmul.f32 %v1660, 0.01
        %v1699 = vmul.f32 %v1662, 0.01
        %v1700 = vmul.f32 %v1666, 0.01
        %v1701 = vmul.f32 %v1668, 0.01
        %v1702 = vmul.f32 %v1672, 0.01
        %v1703 = vmul.f32 %v1674, 0.01
        %v1704 = vsel %vm1676, %v1636, %v1690
        %v1705 = vsel %vm1677, %v1638, %v1691
        %v1706 = vsel %vm1678, %v1642, %v1692
        %v1707 = vsel %vm1679, %v1644, %v1693
        %v1708 = vsel %vm1680, %v1648, %v1694
        %v1709 = vsel %vm1681, %v1650, %v1695
        %v1710 = vsel %vm1682, %v1654, %v1696
        %v1711 = vsel %vm1683, %v1656, %v1697
        %v1712 = vsel %vm1684, %v1660, %v1698
        %v1713 = vsel %vm1685, %v1662, %v1699
        %v1714 = vsel %vm1686, %v1666, %v1700
        %v1715 = vsel %vm1687, %v1668, %v1701
        %v1716 = vsel %vm1688, %v1672, %v1702
        %v1717 = vsel %vm1689, %v1674, %v1703
        %1718 = vmatprep.subr.mxu0 %v1171
        %1719 = vmatpush1.msra.mxu0 %v1170
        %1720 = vmatprep.subr.mxu0 %v1173
        %1721 = vmatpush1.msra.mxu0 %v1172
        %1722 = vmatprep.subr.mxu0 %v1175
        %1723 = vmatpush1.msra.mxu0 %v1174
        %1724 = vmatprep.subr.mxu0 %v1177
        %1725 = vmatpush1.msra.mxu0 %v1176
        %1726 = vmatprep.subr.mxu0 %v1179
        %1727 = vmatpush1.msra.mxu0 %v1178
        %1728 = vmatprep.subr.mxu0 %v1181
        %1729 = vmatpush1.msra.mxu0 %v1180
        %1730 = vmatprep.subr.mxu0 %v1183
        %1731 = vmatpush1.msra.mxu0 %v1182
        %1732 = vmatprep.subr.mxu0 %v1185
        %1733 = vmatpush1.msra.mxu0 %v1184
        %1734 = vmatprep.subr.mxu0 %v1187
        %1735 = vmatpush1.msra.mxu0 %v1186
        %1736 = vmatprep.subr.mxu0 %v1189
        %1737 = vmatpush1.msra.mxu0 %v1188
        %1738 = vmatprep.subr.mxu0 %v1191
        %1739 = vmatpush1.msra.mxu0 %v1190
        %1740 = vmatprep.subr.mxu0 %v1193
        %1741 = vmatpush1.msra.mxu0 %v1192
        %1742 = vmatprep.subr.mxu0 %v1195
        %1743 = vmatpush1.msra.mxu0 %v1194
        %1744 = vmatprep.subr.mxu0 %v1197
        %1745 = vmatpush1.msra.mxu0 %v1196
        %1746 = vmatprep.subr.mxu0 %v1199
        %1747 = vmatpush1.msra.mxu0 %v1198
        %1748 = vmatprep.subr.mxu0 %v1201
        %1749 = vmatpush1.msra.mxu0 %v1200
        %1750 = vmatprep.subr.mxu0 %v1203
        %1751 = vmatpush1.msra.mxu0 %v1202
        %1752 = vmatprep.subr.mxu0 %v1205
        %1753 = vmatpush1.msra.mxu0 %v1204
        %1754 = vmatprep.subr.mxu0 %v1207
        %1755 = vmatpush1.msra.mxu0 %v1206
        %1756 = vmatprep.subr.mxu0 %v1209
        %1757 = vmatpush1.msra.mxu0 %v1208
        %1758 = vmatprep.subr.mxu0 %v1211
        %1759 = vmatpush1.msra.mxu0 %v1210
        %1760 = vmatprep.subr.mxu0 %v1213
        %1761 = vmatpush1.msra.mxu0 %v1212
        %1762 = vmatprep.subr.mxu0 %v1215
        %1763 = vmatpush1.msra.mxu0 %v1214
        %1764 = vmatprep.subr.mxu0 %v1217
        %1765 = vmatpush1.msra.mxu0 %v1216
        %1766 = vmatprep.subr.mxu0 %v1219
        %1767 = vmatpush1.msra.mxu0 %v1218
        %1768 = vmatprep.subr.mxu0 %v1221
        %1769 = vmatpush1.msra.mxu0 %v1220
        %1770 = vmatprep.subr.mxu0 %v1223
        %1771 = vmatpush1.msra.mxu0 %v1222
        %1772 = vmatprep.subr.mxu0 %v1225
        %1773 = vmatpush1.msra.mxu0 %v1224
        %1774 = vmatprep.subr.mxu0 %v1227
        %1775 = vmatpush1.msra.mxu0 %v1226
        %1776 = vmatprep.subr.mxu0 %v1229
        %1777 = vmatpush1.msra.mxu0 %v1228
        %1778 = vmatprep.subr.mxu0 %v1231
        %1779 = vmatpush1.msra.mxu0 %v1230
        %1780 = vmatprep.subr.mxu0 %v1233
        %1781 = vmatpush1.msra.mxu0 %v1232
        %1782 = vmatprep.mubr.f32.mxu0 %v1705
        %1783 = vmatmul.mubr.f32.gmra.mrb[0].mxu0 %v1704
        %v1784 = vpop.f32.mrb[0].mxu0
        %v1785 = vadd.f32 %v1399, %v1784
        %v1786 = vpop.f32.mrb[0].mxu0
        %v1787 = vadd.f32 %v1403, %v1786
        %1788 = vmatprep.mubr.f32.mxu0 %v1707
        %1789 = vmatmul.mubr.f32.gmra.mrb[0].mxu0 %v1706
        %v1790 = vpop.f32.mrb[0].mxu0
        %v1791 = vadd.f32 %v1399, %v1790
        %v1792 = vpop.f32.mrb[0].mxu0
        %v1793 = vadd.f32 %v1403, %v1792
        %1794 = vmatprep.mubr.f32.mxu0 %v1709
        %1795 = vmatmul.mubr.f32.gmra.mrb[0].mxu0 %v1708
        %v1796 = vpop.f32.mrb[0].mxu0
        %v1797 = vadd.f32 %v1399, %v1796
        %v1798 = vpop.f32.mrb[0].mxu0
        %v1799 = vadd.f32 %v1403, %v1798
        %1800 = vmatprep.mubr.f32.mxu0 %v1711
        %1801 = vmatmul.mubr.f32.gmra.mrb[0].mxu0 %v1710
        %v1802 = vpop.f32.mrb[0].mxu0
        %v1803 = vadd.f32 %v1399, %v1802
        %v1804 = vpop.f32.mrb[0].mxu0
        %v1805 = vadd.f32 %v1403, %v1804
        %1806 = vmatprep.mubr.f32.mxu0 %v1713
        %1807 = vmatmul.mubr.f32.gmra.mrb[0].mxu0 %v1712
        %v1808 = vpop.f32.mrb[0].mxu0
        %v1809 = vadd.f32 %v1399, %v1808
        %v1810 = vpop.f32.mrb[0].mxu0
        %v1811 = vadd.f32 %v1403, %v1810
        %1812 = vmatprep.mubr.f32.mxu0 %v1715
        %1813 = vmatmul.mubr.f32.gmra.mrb[0].mxu0 %v1714
        %v1814 = vpop.f32.mrb[0].mxu0
        %v1815 = vadd.f32 %v1399, %v1814
        %v1816 = vpop.f32.mrb[0].mxu0
        %v1817 = vadd.f32 %v1403, %v1816
        %1818 = vmatprep.mubr.f32.mxu0 %v1717
        %1819 = vmatmul.mubr.f32.gmra.mrb[0].mxu0 %v1716
        %v1820 = vpop.f32.mrb[0].mxu0
        %v1821 = vadd.f32 %v1399, %v1820
        %v1822 = vpop.f32.mrb[0].mxu0
        %v1823 = vadd.f32 %v1403, %v1822
        %1824 = vdwg.mxu0
        %vm1825 = vcmp.ge.f32.partialorder %v1785, 0.0
        %vm1826 = vcmp.ge.f32.partialorder %v1787, 0.0
        %vm1827 = vcmp.ge.f32.partialorder %v1791, 0.0
        %vm1828 = vcmp.ge.f32.partialorder %v1793, 0.0
        %vm1829 = vcmp.ge.f32.partialorder %v1797, 0.0
        %vm1830 = vcmp.ge.f32.partialorder %v1799, 0.0
        %vm1831 = vcmp.ge.f32.partialorder %v1803, 0.0
        %vm1832 = vcmp.ge.f32.partialorder %v1805, 0.0
        %vm1833 = vcmp.ge.f32.partialorder %v1809, 0.0
        %vm1834 = vcmp.ge.f32.partialorder %v1811, 0.0
        %vm1835 = vcmp.ge.f32.partialorder %v1815, 0.0
        %vm1836 = vcmp.ge.f32.partialorder %v1817, 0.0
        %vm1837 = vcmp.ge.f32.partialorder %v1821, 0.0
        %vm1838 = vcmp.ge.f32.partialorder %v1823, 0.0
        %v1839 = vmul.f32 %v1785, 0.01
        %v1840 = vmul.f32 %v1787, 0.01
        %v1841 = vmul.f32 %v1791, 0.01
        %v1842 = vmul.f32 %v1793, 0.01
        %v1843 = vmul.f32 %v1797, 0.01
        %v1844 = vmul.f32 %v1799, 0.01
        %v1845 = vmul.f32 %v1803, 0.01
        %v1846 = vmul.f32 %v1805, 0.01
        %v1847 = vmul.f32 %v1809, 0.01
        %v1848 = vmul.f32 %v1811, 0.01
        %v1849 = vmul.f32 %v1815, 0.01
        %v1850 = vmul.f32 %v1817, 0.01
        %v1851 = vmul.f32 %v1821, 0.01
        %v1852 = vmul.f32 %v1823, 0.01
        %v1853 = vsel %vm1825, %v1785, %v1839
        %v1854 = vsel %vm1826, %v1787, %v1840
        %v1855 = vsel %vm1827, %v1791, %v1841
        %v1856 = vsel %vm1828, %v1793, %v1842
        %v1857 = vsel %vm1829, %v1797, %v1843
        %v1858 = vsel %vm1830, %v1799, %v1844
        %v1859 = vsel %vm1831, %v1803, %v1845
        %v1860 = vsel %vm1832, %v1805, %v1846
        %v1861 = vsel %vm1833, %v1809, %v1847
        %v1862 = vsel %vm1834, %v1811, %v1848
        %v1863 = vsel %vm1835, %v1815, %v1849
        %v1864 = vsel %vm1836, %v1817, %v1850
        %v1865 = vsel %vm1837, %v1821, %v1851
        %v1866 = vsel %vm1838, %v1823, %v1852
        %1867 = vst [vmem:[%s448 + $0x10] sm:$0xff] %v1853
        %1868 = vst [vmem:[%s448 + $0x18] sm:$0xff] %v1854
        %1869 = vst [vmem:[%s448 + $0x50] sm:$0xff] %v1855
        %1870 = vst [vmem:[%s448 + $0x58] sm:$0xff] %v1856
        %1871 = vst [vmem:[%s448 + $0x90] sm:$0xff] %v1857
        %1872 = vst [vmem:[%s448 + $0x98] sm:$0xff] %v1858
        %1873 = vst [vmem:[%s448 + $0xd0] sm:$0xff] %v1859
        %1874 = vst [vmem:[%s448 + $0xd8] sm:$0xff] %v1860
        %1875 = vst [vmem:[%s448 + $0x110] sm:$0xff] %v1861
        %1876 = vst [vmem:[%s448 + $0x118] sm:$0xff] %v1862
        %1877 = vst [vmem:[%s448 + $0x150] sm:$0xff] %v1863
        %1878 = vst [vmem:[%s448 + $0x158] sm:$0xff] %v1864
        %1879 = vst [vmem:[%s448 + $0x190] sm:$0xff] %v1865
        %1880 = vst [vmem:[%s448 + $0x198] sm:$0xff] %v1866
        %1881 = vmatprep.subr.mxu0 %v1138
        %1882 = vmatpush1.msra.mxu0 %v1137
        %1883 = vmatprep.subr.mxu0 %v1140
        %1884 = vmatpush1.msra.mxu0 %v1139
        %1885 = vmatprep.subr.mxu0 %v1142
        %1886 = vmatpush1.msra.mxu0 %v1141
        %1887 = vmatprep.subr.mxu0 %v1144
        %1888 = vmatpush1.msra.mxu0 %v1143
        %1889 = vmatprep.subr.mxu0 %v1146
        %1890 = vmatpush1.msra.mxu0 %v1145
        %1891 = vmatprep.subr.mxu0 %v1148
        %1892 = vmatpush1.msra.mxu0 %v1147
        %1893 = vmatprep.subr.mxu0 %v1150
        %1894 = vmatpush1.msra.mxu0 %v1149
        %1895 = vmatprep.subr.mxu0 %v1152
        %1896 = vmatpush1.msra.mxu0 %v1151
        %1897 = vmatprep.subr.mxu0 %v1154
        %1898 = vmatpush1.msra.mxu0 %v1153
        %1899 = vmatprep.subr.mxu0 %v1156
        %1900 = vmatpush1.msra.mxu0 %v1155
        %1901 = vmatprep.subr.mxu0 %v1158
        %1902 = vmatpush1.msra.mxu0 %v1157
        %1903 = vmatprep.subr.mxu0 %v1160
        %1904 = vmatpush1.msra.mxu0 %v1159
        %1905 = vmatprep.subr.mxu0 %v1162
        %1906 = vmatpush1.msra.mxu0 %v1161
        %1907 = vmatprep.subr.mxu0 %v1164
        %1908 = vmatpush1.msra.mxu0 %v1163
        %1909 = vmatprep.subr.mxu0 %v1166
        %1910 = vmatpush1.msra.mxu0 %v1165
        %1911 = vmatprep.subr.mxu0 %v1168
        %1912 = vmatpush1.msra.mxu0 %v1167
        %1913 = vmatprep.subr.mxu0 0.0
        %1914 = vmatpush1.msra.mxu0 0.0
        %1915 = vmatprep.subr.mxu0 0.0
        %1916 = vmatpush1.msra.mxu0 0.0
        %1917 = vmatprep.subr.mxu0 0.0
        %1918 = vmatpush1.msra.mxu0 0.0
        %1919 = vmatprep.subr.mxu0 0.0
        %1920 = vmatpush1.msra.mxu0 0.0
        %1921 = vmatprep.subr.mxu0 0.0
        %1922 = vmatpush1.msra.mxu0 0.0
        %1923 = vmatprep.subr.mxu0 0.0
        %1924 = vmatpush1.msra.mxu0 0.0
        %1925 = vmatprep.subr.mxu0 0.0
        %1926 = vmatpush1.msra.mxu0 0.0
        %1927 = vmatprep.subr.mxu0 0.0
        %1928 = vmatpush1.msra.mxu0 0.0
        %1929 = vmatprep.subr.mxu0 0.0
        %1930 = vmatpush1.msra.mxu0 0.0
        %1931 = vmatprep.subr.mxu0 0.0
        %1932 = vmatpush1.msra.mxu0 0.0
        %1933 = vmatprep.subr.mxu0 0.0
        %1934 = vmatpush1.msra.mxu0 0.0
        %1935 = vmatprep.subr.mxu0 0.0
        %1936 = vmatpush1.msra.mxu0 0.0
        %1937 = vmatprep.subr.mxu0 0.0
        %1938 = vmatpush1.msra.mxu0 0.0
        %1939 = vmatprep.subr.mxu0 0.0
        %1940 = vmatpush1.msra.mxu0 0.0
        %1941 = vmatprep.subr.mxu0 0.0
        %1942 = vmatpush1.msra.mxu0 0.0
        %1943 = vmatprep.subr.mxu0 0.0
        %1944 = vmatpush1.msra.mxu0 0.0
        %1945 = vmatprep.mubr.f32.mxu0 0.0
        %1946 = vmatmul.mubr.f32.gmra.mrb[0].mxu0 %v1111
        %v1947 = vpop.f32.mrb[0].mxu0
        %v1948 = vadd.f32 %v1239, %v1947
        %v1949 = vpop.f32.mrb[0].mxu0
        %v1950 = vadd.f32 %v1243, %v1949
        %1951 = vmatprep.mubr.f32.mxu0 0.0
        %1952 = vmatmul.mubr.f32.gmra.mrb[0].mxu0 %v1115
        %v1953 = vpop.f32.mrb[0].mxu0
        %v1954 = vadd.f32 %v1239, %v1953
        %v1955 = vpop.f32.mrb[0].mxu0
        %v1956 = vadd.f32 %v1243, %v1955
        %1957 = vmatprep.mubr.f32.mxu0 0.0
        %1958 = vmatmul.mubr.f32.gmra.mrb[0].mxu0 %v1119
        %v1959 = vpop.f32.mrb[0].mxu0
        %v1960 = vadd.f32 %v1239, %v1959
        %v1961 = vpop.f32.mrb[0].mxu0
        %v1962 = vadd.f32 %v1243, %v1961
        %1963 = vmatprep.mubr.f32.mxu0 0.0
        %1964 = vmatmul.mubr.f32.gmra.mrb[0].mxu0 %v1123
        %v1965 = vpop.f32.mrb[0].mxu0
        %v1966 = vadd.f32 %v1239, %v1965
        %v1967 = vpop.f32.mrb[0].mxu0
        %v1968 = vadd.f32 %v1243, %v1967
        %1969 = vmatprep.mubr.f32.mxu0 0.0
        %1970 = vmatmul.mubr.f32.gmra.mrb[0].mxu0 %v1127
        %v1971 = vpop.f32.mrb[0].mxu0
        %v1972 = vadd.f32 %v1239, %v1971
        %v1973 = vpop.f32.mrb[0].mxu0
        %v1974 = vadd.f32 %v1243, %v1973
        %1975 = vmatprep.mubr.f32.mxu0 0.0
        %1976 = vmatmul.mubr.f32.gmra.mrb[0].mxu0 %v1131
        %v1977 = vpop.f32.mrb[0].mxu0
        %v1978 = vadd.f32 %v1239, %v1977
        %v1979 = vpop.f32.mrb[0].mxu0
        %v1980 = vadd.f32 %v1243, %v1979
        %1981 = vmatprep.mubr.f32.mxu0 0.0
        %1982 = vmatmul.mubr.f32.gmra.mrb[0].mxu0 %v1135
        %v1983 = vpop.f32.mrb[0].mxu0
        %v1984 = vadd.f32 %v1239, %v1983
        %v1985 = vpop.f32.mrb[0].mxu0
        %v1986 = vadd.f32 %v1243, %v1985
        %1987 = vdwg.mxu0
        %vm1988 = vcmp.ge.f32.partialorder %v1948, 0.0
        %vm1989 = vcmp.ge.f32.partialorder %v1950, 0.0
        %vm1990 = vcmp.ge.f32.partialorder %v1954, 0.0
        %vm1991 = vcmp.ge.f32.partialorder %v1956, 0.0
        %vm1992 = vcmp.ge.f32.partialorder %v1960, 0.0
        %vm1993 = vcmp.ge.f32.partialorder %v1962, 0.0
        %vm1994 = vcmp.ge.f32.partialorder %v1966, 0.0
        %vm1995 = vcmp.ge.f32.partialorder %v1968, 0.0
        %vm1996 = vcmp.ge.f32.partialorder %v1972, 0.0
        %vm1997 = vcmp.ge.f32.partialorder %v1974, 0.0
        %vm1998 = vcmp.ge.f32.partialorder %v1978, 0.0
        %vm1999 = vcmp.ge.f32.partialorder %v1980, 0.0
        %vm2000 = vcmp.ge.f32.partialorder %v1984, 0.0
        %vm2001 = vcmp.ge.f32.partialorder %v1986, 0.0
        %v2002 = vmul.f32 %v1948, 0.01
        %v2003 = vmul.f32 %v1950, 0.01
        %v2004 = vmul.f32 %v1954, 0.01
        %v2005 = vmul.f32 %v1956, 0.01
        %v2006 = vmul.f32 %v1960, 0.01
        %v2007 = vmul.f32 %v1962, 0.01
        %v2008 = vmul.f32 %v1966, 0.01
        %v2009 = vmul.f32 %v1968, 0.01
        %v2010 = vmul.f32 %v1972, 0.01
        %v2011 = vmul.f32 %v1974, 0.01
        %v2012 = vmul.f32 %v1978, 0.01
        %v2013 = vmul.f32 %v1980, 0.01
        %v2014 = vmul.f32 %v1984, 0.01
        %v2015 = vmul.f32 %v1986, 0.01
        %v2016 = vsel %vm1988, %v1948, %v2002
        %v2017 = vsel %vm1989, %v1950, %v2003
        %v2018 = vsel %vm1990, %v1954, %v2004
        %v2019 = vsel %vm1991, %v1956, %v2005
        %v2020 = vsel %vm1992, %v1960, %v2006
        %v2021 = vsel %vm1993, %v1962, %v2007
        %v2022 = vsel %vm1994, %v1966, %v2008
        %v2023 = vsel %vm1995, %v1968, %v2009
        %v2024 = vsel %vm1996, %v1972, %v2010
        %v2025 = vsel %vm1997, %v1974, %v2011
        %v2026 = vsel %vm1998, %v1978, %v2012
        %v2027 = vsel %vm1999, %v1980, %v2013
        %v2028 = vsel %vm2000, %v1984, %v2014
        %v2029 = vsel %vm2001, %v1986, %v2015
        %2030 = vmatprep.subr.mxu0 %v1171
        %2031 = vmatpush1.msra.mxu0 %v1170
        %2032 = vmatprep.subr.mxu0 %v1173
        %2033 = vmatpush1.msra.mxu0 %v1172
        %2034 = vmatprep.subr.mxu0 %v1175
        %2035 = vmatpush1.msra.mxu0 %v1174
        %2036 = vmatprep.subr.mxu0 %v1177
        %2037 = vmatpush1.msra.mxu0 %v1176
        %2038 = vmatprep.subr.mxu0 %v1179
        %2039 = vmatpush1.msra.mxu0 %v1178
        %2040 = vmatprep.subr.mxu0 %v1181
        %2041 = vmatpush1.msra.mxu0 %v1180
        %2042 = vmatprep.subr.mxu0 %v1183
        %2043 = vmatpush1.msra.mxu0 %v1182
        %2044 = vmatprep.subr.mxu0 %v1185
        %2045 = vmatpush1.msra.mxu0 %v1184
        %2046 = vmatprep.subr.mxu0 %v1187
        %2047 = vmatpush1.msra.mxu0 %v1186
        %2048 = vmatprep.subr.mxu0 %v1189
        %2049 = vmatpush1.msra.mxu0 %v1188
        %2050 = vmatprep.subr.mxu0 %v1191
        %2051 = vmatpush1.msra.mxu0 %v1190
        %2052 = vmatprep.subr.mxu0 %v1193
        %2053 = vmatpush1.msra.mxu0 %v1192
        %2054 = vmatprep.subr.mxu0 %v1195
        %2055 = vmatpush1.msra.mxu0 %v1194
        %2056 = vmatprep.subr.mxu0 %v1197
        %2057 = vmatpush1.msra.mxu0 %v1196
        %2058 = vmatprep.subr.mxu0 %v1199
        %2059 = vmatpush1.msra.mxu0 %v1198
        %2060 = vmatprep.subr.mxu0 %v1201
        %2061 = vmatpush1.msra.mxu0 %v1200
        %2062 = vmatprep.subr.mxu0 %v1203
        %2063 = vmatpush1.msra.mxu0 %v1202
        %2064 = vmatprep.subr.mxu0 %v1205
        %2065 = vmatpush1.msra.mxu0 %v1204
        %2066 = vmatprep.subr.mxu0 %v1207
        %2067 = vmatpush1.msra.mxu0 %v1206
        %2068 = vmatprep.subr.mxu0 %v1209
        %2069 = vmatpush1.msra.mxu0 %v1208
        %2070 = vmatprep.subr.mxu0 %v1211
        %2071 = vmatpush1.msra.mxu0 %v1210
        %2072 = vmatprep.subr.mxu0 %v1213
        %2073 = vmatpush1.msra.mxu0 %v1212
        %2074 = vmatprep.subr.mxu0 %v1215
        %2075 = vmatpush1.msra.mxu0 %v1214
        %2076 = vmatprep.subr.mxu0 %v1217
        %2077 = vmatpush1.msra.mxu0 %v1216
        %2078 = vmatprep.subr.mxu0 %v1219
        %2079 = vmatpush1.msra.mxu0 %v1218
        %2080 = vmatprep.subr.mxu0 %v1221
        %2081 = vmatpush1.msra.mxu0 %v1220
        %2082 = vmatprep.subr.mxu0 %v1223
        %2083 = vmatpush1.msra.mxu0 %v1222
        %2084 = vmatprep.subr.mxu0 %v1225
        %2085 = vmatpush1.msra.mxu0 %v1224
        %2086 = vmatprep.subr.mxu0 %v1227
        %2087 = vmatpush1.msra.mxu0 %v1226
        %2088 = vmatprep.subr.mxu0 %v1229
        %2089 = vmatpush1.msra.mxu0 %v1228
        %2090 = vmatprep.subr.mxu0 %v1231
        %2091 = vmatpush1.msra.mxu0 %v1230
        %2092 = vmatprep.subr.mxu0 %v1233
        %2093 = vmatpush1.msra.mxu0 %v1232
        %2094 = vmatprep.mubr.f32.mxu0 %v2017
        %2095 = vmatmul.mubr.f32.gmra.mrb[0].mxu0 %v2016
        %v2096 = vpop.f32.mrb[0].mxu0
        %v2097 = vadd.f32 %v1399, %v2096
        %v2098 = vpop.f32.mrb[0].mxu0
        %v2099 = vadd.f32 %v1403, %v2098
        %2100 = vmatprep.mubr.f32.mxu0 %v2019
        %2101 = vmatmul.mubr.f32.gmra.mrb[0].mxu0 %v2018
        %v2102 = vpop.f32.mrb[0].mxu0
        %v2103 = vadd.f32 %v1399, %v2102
        %v2104 = vpop.f32.mrb[0].mxu0
        %v2105 = vadd.f32 %v1403, %v2104
        %2106 = vmatprep.mubr.f32.mxu0 %v2021
        %2107 = vmatmul.mubr.f32.gmra.mrb[0].mxu0 %v2020
        %v2108 = vpop.f32.mrb[0].mxu0
        %v2109 = vadd.f32 %v1399, %v2108
        %v2110 = vpop.f32.mrb[0].mxu0
        %v2111 = vadd.f32 %v1403, %v2110
        %2112 = vmatprep.mubr.f32.mxu0 %v2023
        %2113 = vmatmul.mubr.f32.gmra.mrb[0].mxu0 %v2022
        %v2114 = vpop.f32.mrb[0].mxu0
        %v2115 = vadd.f32 %v1399, %v2114
        %v2116 = vpop.f32.mrb[0].mxu0
        %v2117 = vadd.f32 %v1403, %v2116
        %2118 = vmatprep.mubr.f32.mxu0 %v2025
        %2119 = vmatmul.mubr.f32.gmra.mrb[0].mxu0 %v2024
        %v2120 = vpop.f32.mrb[0].mxu0
        %v2121 = vadd.f32 %v1399, %v2120
        %v2122 = vpop.f32.mrb[0].mxu0
        %v2123 = vadd.f32 %v1403, %v2122
        %2124 = vmatprep.mubr.f32.mxu0 %v2027
        %2125 = vmatmul.mubr.f32.gmra.mrb[0].mxu0 %v2026
        %v2126 = vpop.f32.mrb[0].mxu0
        %v2127 = vadd.f32 %v1399, %v2126
        %v2128 = vpop.f32.mrb[0].mxu0
        %v2129 = vadd.f32 %v1403, %v2128
        %2130 = vmatprep.mubr.f32.mxu0 %v2029
        %2131 = vmatmul.mubr.f32.gmra.mrb[0].mxu0 %v2028
        %v2132 = vpop.f32.mrb[0].mxu0
        %v2133 = vadd.f32 %v1399, %v2132
        %v2134 = vpop.f32.mrb[0].mxu0
        %v2135 = vadd.f32 %v1403, %v2134
        %2136 = vdwg.mxu0
        %vm2137 = vcmp.ge.f32.partialorder %v2097, 0.0
        %vm2138 = vcmp.ge.f32.partialorder %v2099, 0.0
        %vm2139 = vcmp.ge.f32.partialorder %v2103, 0.0
        %vm2140 = vcmp.ge.f32.partialorder %v2105, 0.0
        %vm2141 = vcmp.ge.f32.partialorder %v2109, 0.0
        %vm2142 = vcmp.ge.f32.partialorder %v2111, 0.0
        %vm2143 = vcmp.ge.f32.partialorder %v2115, 0.0
        %vm2144 = vcmp.ge.f32.partialorder %v2117, 0.0
        %vm2145 = vcmp.ge.f32.partialorder %v2121, 0.0
        %vm2146 = vcmp.ge.f32.partialorder %v2123, 0.0
        %vm2147 = vcmp.ge.f32.partialorder %v2127, 0.0
        %vm2148 = vcmp.ge.f32.partialorder %v2129, 0.0
        %vm2149 = vcmp.ge.f32.partialorder %v2133, 0.0
        %vm2150 = vcmp.ge.f32.partialorder %v2135, 0.0
        %v2151 = vmul.f32 %v2097, 0.01
        %v2152 = vmul.f32 %v2099, 0.01
        %v2153 = vmul.f32 %v2103, 0.01
        %v2154 = vmul.f32 %v2105, 0.01
        %v2155 = vmul.f32 %v2109, 0.01
        %v2156 = vmul.f32 %v2111, 0.01
        %v2157 = vmul.f32 %v2115, 0.01
        %v2158 = vmul.f32 %v2117, 0.01
        %v2159 = vmul.f32 %v2121, 0.01
        %v2160 = vmul.f32 %v2123, 0.01
        %v2161 = vmul.f32 %v2127, 0.01
        %v2162 = vmul.f32 %v2129, 0.01
        %v2163 = vmul.f32 %v2133, 0.01
        %v2164 = vmul.f32 %v2135, 0.01
        %v2165 = vsel %vm2137, %v2097, %v2151
        %v2166 = vsel %vm2138, %v2099, %v2152
        %v2167 = vsel %vm2139, %v2103, %v2153
        %v2168 = vsel %vm2140, %v2105, %v2154
        %v2169 = vsel %vm2141, %v2109, %v2155
        %v2170 = vsel %vm2142, %v2111, %v2156
        %v2171 = vsel %vm2143, %v2115, %v2157
        %v2172 = vsel %vm2144, %v2117, %v2158
        %v2173 = vsel %vm2145, %v2121, %v2159
        %v2174 = vsel %vm2146, %v2123, %v2160
        %v2175 = vsel %vm2147, %v2127, %v2161
        %v2176 = vsel %vm2148, %v2129, %v2162
        %v2177 = vsel %vm2149, %v2133, %v2163
        %v2178 = vsel %vm2150, %v2135, %v2164
        %2179 = vst [vmem:[%s448 + $0x20] sm:$0xff] %v2165
        %2180 = vst [vmem:[%s448 + $0x28] sm:$0xff] %v2166
        %2181 = vst [vmem:[%s448 + $0x60] sm:$0xff] %v2167
        %2182 = vst [vmem:[%s448 + $0x68] sm:$0xff] %v2168
        %2183 = vst [vmem:[%s448 + $0xa0] sm:$0xff] %v2169
        %2184 = vst [vmem:[%s448 + $0xa8] sm:$0xff] %v2170
        %2185 = vst [vmem:[%s448 + $0xe0] sm:$0xff] %v2171
        %2186 = vst [vmem:[%s448 + $0xe8] sm:$0xff] %v2172
        %2187 = vst [vmem:[%s448 + $0x120] sm:$0xff] %v2173
        %2188 = vst [vmem:[%s448 + $0x128] sm:$0xff] %v2174
        %2189 = vst [vmem:[%s448 + $0x160] sm:$0xff] %v2175
        %2190 = vst [vmem:[%s448 + $0x168] sm:$0xff] %v2176
        %2191 = vst [vmem:[%s448 + $0x1a0] sm:$0xff] %v2177
        %2192 = vst [vmem:[%s448 + $0x1a8] sm:$0xff] %v2178
        %2193 = vmatprep.subr.mxu0 %v1138
        %2194 = vmatpush1.msra.mxu0 %v1137
        %2195 = vmatprep.subr.mxu0 %v1140
        %2196 = vmatpush1.msra.mxu0 %v1139
        %2197 = vmatprep.subr.mxu0 %v1142
        %2198 = vmatpush1.msra.mxu0 %v1141
        %2199 = vmatprep.subr.mxu0 %v1144
        %2200 = vmatpush1.msra.mxu0 %v1143
        %2201 = vmatprep.subr.mxu0 %v1146
        %2202 = vmatpush1.msra.mxu0 %v1145
        %2203 = vmatprep.subr.mxu0 %v1148
        %2204 = vmatpush1.msra.mxu0 %v1147
        %2205 = vmatprep.subr.mxu0 %v1150
        %2206 = vmatpush1.msra.mxu0 %v1149
        %2207 = vmatprep.subr.mxu0 %v1152
        %2208 = vmatpush1.msra.mxu0 %v1151
        %2209 = vmatprep.subr.mxu0 %v1154
        %2210 = vmatpush1.msra.mxu0 %v1153
        %2211 = vmatprep.subr.mxu0 %v1156
        %2212 = vmatpush1.msra.mxu0 %v1155
        %2213 = vmatprep.subr.mxu0 %v1158
        %2214 = vmatpush1.msra.mxu0 %v1157
        %2215 = vmatprep.subr.mxu0 %v1160
        %2216 = vmatpush1.msra.mxu0 %v1159
        %2217 = vmatprep.subr.mxu0 %v1162
        %2218 = vmatpush1.msra.mxu0 %v1161
        %2219 = vmatprep.subr.mxu0 %v1164
        %2220 = vmatpush1.msra.mxu0 %v1163
        %2221 = vmatprep.subr.mxu0 %v1166
        %2222 = vmatpush1.msra.mxu0 %v1165
        %2223 = vmatprep.subr.mxu0 %v1168
        %2224 = vmatpush1.msra.mxu0 %v1167
        %2225 = vmatprep.subr.mxu0 0.0
        %2226 = vmatpush1.msra.mxu0 0.0
        %2227 = vmatprep.subr.mxu0 0.0
        %2228 = vmatpush1.msra.mxu0 0.0
        %2229 = vmatprep.subr.mxu0 0.0
        %2230 = vmatpush1.msra.mxu0 0.0
        %2231 = vmatprep.subr.mxu0 0.0
        %2232 = vmatpush1.msra.mxu0 0.0
        %2233 = vmatprep.subr.mxu0 0.0
        %2234 = vmatpush1.msra.mxu0 0.0
        %2235 = vmatprep.subr.mxu0 0.0
        %2236 = vmatpush1.msra.mxu0 0.0
        %2237 = vmatprep.subr.mxu0 0.0
        %2238 = vmatpush1.msra.mxu0 0.0
        %2239 = vmatprep.subr.mxu0 0.0
        %2240 = vmatpush1.msra.mxu0 0.0
        %2241 = vmatprep.subr.mxu0 0.0
        %2242 = vmatpush1.msra.mxu0 0.0
        %2243 = vmatprep.subr.mxu0 0.0
        %2244 = vmatpush1.msra.mxu0 0.0
        %2245 = vmatprep.subr.mxu0 0.0
        %2246 = vmatpush1.msra.mxu0 0.0
        %2247 = vmatprep.subr.mxu0 0.0
        %2248 = vmatpush1.msra.mxu0 0.0
        %2249 = vmatprep.subr.mxu0 0.0
        %2250 = vmatpush1.msra.mxu0 0.0
        %2251 = vmatprep.subr.mxu0 0.0
        %2252 = vmatpush1.msra.mxu0 0.0
        %2253 = vmatprep.subr.mxu0 0.0
        %2254 = vmatpush1.msra.mxu0 0.0
        %2255 = vmatprep.subr.mxu0 0.0
        %2256 = vmatpush1.msra.mxu0 0.0
        %2257 = vmatprep.mubr.f32.mxu0 0.0
        %2258 = vmatmul.mubr.f32.gmra.mrb[0].mxu0 %v1112
        %v2259 = vpop.f32.mrb[0].mxu0
        %v2260 = vadd.f32 %v1239, %v2259
        %v2261 = vpop.f32.mrb[0].mxu0
        %v2262 = vadd.f32 %v1243, %v2261
        %2263 = vmatprep.mubr.f32.mxu0 0.0
        %2264 = vmatmul.mubr.f32.gmra.mrb[0].mxu0 %v1116
        %v2265 = vpop.f32.mrb[0].mxu0
        %v2266 = vadd.f32 %v1239, %v2265
        %v2267 = vpop.f32.mrb[0].mxu0
        %v2268 = vadd.f32 %v1243, %v2267
        %2269 = vmatprep.mubr.f32.mxu0 0.0
        %2270 = vmatmul.mubr.f32.gmra.mrb[0].mxu0 %v1120
        %v2271 = vpop.f32.mrb[0].mxu0
        %v2272 = vadd.f32 %v1239, %v2271
        %v2273 = vpop.f32.mrb[0].mxu0
        %v2274 = vadd.f32 %v1243, %v2273
        %2275 = vmatprep.mubr.f32.mxu0 0.0
        %2276 = vmatmul.mubr.f32.gmra.mrb[0].mxu0 %v1124
        %v2277 = vpop.f32.mrb[0].mxu0
        %v2278 = vadd.f32 %v1239, %v2277
        %v2279 = vpop.f32.mrb[0].mxu0
        %v2280 = vadd.f32 %v1243, %v2279
        %2281 = vmatprep.mubr.f32.mxu0 0.0
        %2282 = vmatmul.mubr.f32.gmra.mrb[0].mxu0 %v1128
        %v2283 = vpop.f32.mrb[0].mxu0
        %v2284 = vadd.f32 %v1239, %v2283
        %v2285 = vpop.f32.mrb[0].mxu0
        %v2286 = vadd.f32 %v1243, %v2285
        %2287 = vmatprep.mubr.f32.mxu0 0.0
        %2288 = vmatmul.mubr.f32.gmra.mrb[0].mxu0 %v1132
        %v2289 = vpop.f32.mrb[0].mxu0
        %v2290 = vadd.f32 %v1239, %v2289
        %v2291 = vpop.f32.mrb[0].mxu0
        %v2292 = vadd.f32 %v1243, %v2291
        %2293 = vmatprep.mubr.f32.mxu0 0.0
        %2294 = vmatmul.mubr.f32.gmra.mrb[0].mxu0 %v1136
        %v2295 = vpop.f32.mrb[0].mxu0
        %v2296 = vadd.f32 %v1239, %v2295
        %v2297 = vpop.f32.mrb[0].mxu0
        %v2298 = vadd.f32 %v1243, %v2297
        %2299 = vdwg.mxu0
        %vm2300 = vcmp.ge.f32.partialorder %v2260, 0.0
        %vm2301 = vcmp.ge.f32.partialorder %v2262, 0.0
        %vm2302 = vcmp.ge.f32.partialorder %v2266, 0.0
        %vm2303 = vcmp.ge.f32.partialorder %v2268, 0.0
        %vm2304 = vcmp.ge.f32.partialorder %v2272, 0.0
        %vm2305 = vcmp.ge.f32.partialorder %v2274, 0.0
        %vm2306 = vcmp.ge.f32.partialorder %v2278, 0.0
        %vm2307 = vcmp.ge.f32.partialorder %v2280, 0.0
        %vm2308 = vcmp.ge.f32.partialorder %v2284, 0.0
        %vm2309 = vcmp.ge.f32.partialorder %v2286, 0.0
        %vm2310 = vcmp.ge.f32.partialorder %v2290, 0.0
        %vm2311 = vcmp.ge.f32.partialorder %v2292, 0.0
        %vm2312 = vcmp.ge.f32.partialorder %v2296, 0.0
        %vm2313 = vcmp.ge.f32.partialorder %v2298, 0.0
        %v2314 = vmul.f32 %v2260, 0.01
        %v2315 = vmul.f32 %v2262, 0.01
        %v2316 = vmul.f32 %v2266, 0.01
        %v2317 = vmul.f32 %v2268, 0.01
        %v2318 = vmul.f32 %v2272, 0.01
        %v2319 = vmul.f32 %v2274, 0.01
        %v2320 = vmul.f32 %v2278, 0.01
        %v2321 = vmul.f32 %v2280, 0.01
        %v2322 = vmul.f32 %v2284, 0.01
        %v2323 = vmul.f32 %v2286, 0.01
        %v2324 = vmul.f32 %v2290, 0.01
        %v2325 = vmul.f32 %v2292, 0.01
        %v2326 = vmul.f32 %v2296, 0.01
        %v2327 = vmul.f32 %v2298, 0.01
        %v2328 = vsel %vm2300, %v2260, %v2314
        %v2329 = vsel %vm2301, %v2262, %v2315
        %v2330 = vsel %vm2302, %v2266, %v2316
        %v2331 = vsel %vm2303, %v2268, %v2317
        %v2332 = vsel %vm2304, %v2272, %v2318
        %v2333 = vsel %vm2305, %v2274, %v2319
        %v2334 = vsel %vm2306, %v2278, %v2320
        %v2335 = vsel %vm2307, %v2280, %v2321
        %v2336 = vsel %vm2308, %v2284, %v2322
        %v2337 = vsel %vm2309, %v2286, %v2323
        %v2338 = vsel %vm2310, %v2290, %v2324
        %v2339 = vsel %vm2311, %v2292, %v2325
        %v2340 = vsel %vm2312, %v2296, %v2326
        %v2341 = vsel %vm2313, %v2298, %v2327
        %2342 = vmatprep.subr.mxu0 %v1171
        %2343 = vmatpush1.msra.mxu0 %v1170
        %2344 = vmatprep.subr.mxu0 %v1173
        %2345 = vmatpush1.msra.mxu0 %v1172
        %2346 = vmatprep.subr.mxu0 %v1175
        %2347 = vmatpush1.msra.mxu0 %v1174
        %2348 = vmatprep.subr.mxu0 %v1177
        %2349 = vmatpush1.msra.mxu0 %v1176
        %2350 = vmatprep.subr.mxu0 %v1179
        %2351 = vmatpush1.msra.mxu0 %v1178
        %2352 = vmatprep.subr.mxu0 %v1181
        %2353 = vmatpush1.msra.mxu0 %v1180
        %2354 = vmatprep.subr.mxu0 %v1183
        %2355 = vmatpush1.msra.mxu0 %v1182
        %2356 = vmatprep.subr.mxu0 %v1185
        %2357 = vmatpush1.msra.mxu0 %v1184
        %2358 = vmatprep.subr.mxu0 %v1187
        %2359 = vmatpush1.msra.mxu0 %v1186
        %2360 = vmatprep.subr.mxu0 %v1189
        %2361 = vmatpush1.msra.mxu0 %v1188
        %2362 = vmatprep.subr.mxu0 %v1191
        %2363 = vmatpush1.msra.mxu0 %v1190
        %2364 = vmatprep.subr.mxu0 %v1193
        %2365 = vmatpush1.msra.mxu0 %v1192
        %2366 = vmatprep.subr.mxu0 %v1195
        %2367 = vmatpush1.msra.mxu0 %v1194
        %2368 = vmatprep.subr.mxu0 %v1197
        %2369 = vmatpush1.msra.mxu0 %v1196
        %2370 = vmatprep.subr.mxu0 %v1199
        %2371 = vmatpush1.msra.mxu0 %v1198
        %2372 = vmatprep.subr.mxu0 %v1201
        %2373 = vmatpush1.msra.mxu0 %v1200
        %2374 = vmatprep.subr.mxu0 %v1203
        %2375 = vmatpush1.msra.mxu0 %v1202
        %2376 = vmatprep.subr.mxu0 %v1205
        %2377 = vmatpush1.msra.mxu0 %v1204
        %2378 = vmatprep.subr.mxu0 %v1207
        %2379 = vmatpush1.msra.mxu0 %v1206
        %2380 = vmatprep.subr.mxu0 %v1209
        %2381 = vmatpush1.msra.mxu0 %v1208
        %2382 = vmatprep.subr.mxu0 %v1211
        %2383 = vmatpush1.msra.mxu0 %v1210
        %2384 = vmatprep.subr.mxu0 %v1213
        %2385 = vmatpush1.msra.mxu0 %v1212
        %2386 = vmatprep.subr.mxu0 %v1215
        %2387 = vmatpush1.msra.mxu0 %v1214
        %2388 = vmatprep.subr.mxu0 %v1217
        %2389 = vmatpush1.msra.mxu0 %v1216
        %2390 = vmatprep.subr.mxu0 %v1219
        %2391 = vmatpush1.msra.mxu0 %v1218
        %2392 = vmatprep.subr.mxu0 %v1221
        %2393 = vmatpush1.msra.mxu0 %v1220
        %2394 = vmatprep.subr.mxu0 %v1223
        %2395 = vmatpush1.msra.mxu0 %v1222
        %2396 = vmatprep.subr.mxu0 %v1225
        %2397 = vmatpush1.msra.mxu0 %v1224
        %2398 = vmatprep.subr.mxu0 %v1227
        %2399 = vmatpush1.msra.mxu0 %v1226
        %2400 = vmatprep.subr.mxu0 %v1229
        %2401 = vmatpush1.msra.mxu0 %v1228
        %2402 = vmatprep.subr.mxu0 %v1231
        %2403 = vmatpush1.msra.mxu0 %v1230
        %2404 = vmatprep.subr.mxu0 %v1233
        %2405 = vmatpush1.msra.mxu0 %v1232
        %2406 = vmatprep.mubr.f32.mxu0 %v2329
        %2407 = vmatmul.mubr.f32.gmra.mrb[0].mxu0 %v2328
        %v2408 = vpop.f32.mrb[0].mxu0
        %v2409 = vadd.f32 %v1399, %v2408
        %v2410 = vpop.f32.mrb[0].mxu0
        %v2411 = vadd.f32 %v1403, %v2410
        %2412 = vmatprep.mubr.f32.mxu0 %v2331
        %2413 = vmatmul.mubr.f32.gmra.mrb[0].mxu0 %v2330
        %v2414 = vpop.f32.mrb[0].mxu0
        %v2415 = vadd.f32 %v1399, %v2414
        %v2416 = vpop.f32.mrb[0].mxu0
        %v2417 = vadd.f32 %v1403, %v2416
        %2418 = vmatprep.mubr.f32.mxu0 %v2333
        %2419 = vmatmul.mubr.f32.gmra.mrb[0].mxu0 %v2332
        %v2420 = vpop.f32.mrb[0].mxu0
        %v2421 = vadd.f32 %v1399, %v2420
        %v2422 = vpop.f32.mrb[0].mxu0
        %v2423 = vadd.f32 %v1403, %v2422
        %2424 = vmatprep.mubr.f32.mxu0 %v2335
        %2425 = vmatmul.mubr.f32.gmra.mrb[0].mxu0 %v2334
        %v2426 = vpop.f32.mrb[0].mxu0
        %v2427 = vadd.f32 %v1399, %v2426
        %v2428 = vpop.f32.mrb[0].mxu0
        %v2429 = vadd.f32 %v1403, %v2428
        %2430 = vmatprep.mubr.f32.mxu0 %v2337
        %2431 = vmatmul.mubr.f32.gmra.mrb[0].mxu0 %v2336
        %v2432 = vpop.f32.mrb[0].mxu0
        %v2433 = vadd.f32 %v1399, %v2432
        %v2434 = vpop.f32.mrb[0].mxu0
        %v2435 = vadd.f32 %v1403, %v2434
        %2436 = vmatprep.mubr.f32.mxu0 %v2339
        %2437 = vmatmul.mubr.f32.gmra.mrb[0].mxu0 %v2338
        %v2438 = vpop.f32.mrb[0].mxu0
        %v2439 = vadd.f32 %v1399, %v2438
        %v2440 = vpop.f32.mrb[0].mxu0
        %v2441 = vadd.f32 %v1403, %v2440
        %2442 = vmatprep.mubr.f32.mxu0 %v2341
        %2443 = vmatmul.mubr.f32.gmra.mrb[0].mxu0 %v2340
        %v2444 = vpop.f32.mrb[0].mxu0
        %v2445 = vadd.f32 %v1399, %v2444
        %v2446 = vpop.f32.mrb[0].mxu0
        %v2447 = vadd.f32 %v1403, %v2446
        %2448 = vdwg.mxu0
        %vm2449 = vcmp.ge.f32.partialorder %v2409, 0.0
        %vm2450 = vcmp.ge.f32.partialorder %v2411, 0.0
        %vm2451 = vcmp.ge.f32.partialorder %v2415, 0.0
        %vm2452 = vcmp.ge.f32.partialorder %v2417, 0.0
        %vm2453 = vcmp.ge.f32.partialorder %v2421, 0.0
        %vm2454 = vcmp.ge.f32.partialorder %v2423, 0.0
        %vm2455 = vcmp.ge.f32.partialorder %v2427, 0.0
        %vm2456 = vcmp.ge.f32.partialorder %v2429, 0.0
        %vm2457 = vcmp.ge.f32.partialorder %v2433, 0.0
        %vm2458 = vcmp.ge.f32.partialorder %v2435, 0.0
        %vm2459 = vcmp.ge.f32.partialorder %v2439, 0.0
        %vm2460 = vcmp.ge.f32.partialorder %v2441, 0.0
        %vm2461 = vcmp.ge.f32.partialorder %v2445, 0.0
        %vm2462 = vcmp.ge.f32.partialorder %v2447, 0.0
        %v2463 = vmul.f32 %v2409, 0.01
        %v2464 = vmul.f32 %v2411, 0.01
        %v2465 = vmul.f32 %v2415, 0.01
        %v2466 = vmul.f32 %v2417, 0.01
        %v2467 = vmul.f32 %v2421, 0.01
        %v2468 = vmul.f32 %v2423, 0.01
        %v2469 = vmul.f32 %v2427, 0.01
        %v2470 = vmul.f32 %v2429, 0.01
        %v2471 = vmul.f32 %v2433, 0.01
        %v2472 = vmul.f32 %v2435, 0.01
        %v2473 = vmul.f32 %v2439, 0.01
        %v2474 = vmul.f32 %v2441, 0.01
        %v2475 = vmul.f32 %v2445, 0.01
        %v2476 = vmul.f32 %v2447, 0.01
        %v2477 = vsel %vm2449, %v2409, %v2463
        %v2478 = vsel %vm2450, %v2411, %v2464
        %v2479 = vsel %vm2451, %v2415, %v2465
        %v2480 = vsel %vm2452, %v2417, %v2466
        %v2481 = vsel %vm2453, %v2421, %v2467
        %v2482 = vsel %vm2454, %v2423, %v2468
        %v2483 = vsel %vm2455, %v2427, %v2469
        %v2484 = vsel %vm2456, %v2429, %v2470
        %v2485 = vsel %vm2457, %v2433, %v2471
        %v2486 = vsel %vm2458, %v2435, %v2472
        %v2487 = vsel %vm2459, %v2439, %v2473
        %v2488 = vsel %vm2460, %v2441, %v2474
        %v2489 = vsel %vm2461, %v2445, %v2475
        %v2490 = vsel %vm2462, %v2447, %v2476
        %2491 = vst [vmem:[%s448 + $0x30] sm:$0xff] %v2477
        %2492 = vst [vmem:[%s448 + $0x38] sm:$0xff] %v2478
        %2493 = vst [vmem:[%s448 + $0x70] sm:$0xff] %v2479
        %2494 = vst [vmem:[%s448 + $0x78] sm:$0xff] %v2480
        %2495 = vst [vmem:[%s448 + $0xb0] sm:$0xff] %v2481
        %2496 = vst [vmem:[%s448 + $0xb8] sm:$0xff] %v2482
        %2497 = vst [vmem:[%s448 + $0xf0] sm:$0xff] %v2483
        %2498 = vst [vmem:[%s448 + $0xf8] sm:$0xff] %v2484
        %2499 = vst [vmem:[%s448 + $0x130] sm:$0xff] %v2485
        %2500 = vst [vmem:[%s448 + $0x138] sm:$0xff] %v2486
        %2501 = vst [vmem:[%s448 + $0x170] sm:$0xff] %v2487
        %2502 = vst [vmem:[%s448 + $0x178] sm:$0xff] %v2488
        %2503 = vst [vmem:[%s448 + $0x1b0] sm:$0xff] %v2489
        %2504 = vst [vmem:[%s448 + $0x1b8] sm:$0xff] %v2490
        %s2505 = smul.u32 7, %s25
        %p2506 = scmp.lt.s32.totalorder %s2505, 13
        %s2507 = scalar_select %p2506, %s2505, 13
        %s2508 = smul.addr %s2507, 8
        %s2509 = smul.addr %s2508, 8
        %s2510 = scalar_lea.vmem %s9, %s2509
        // Predicated region
        $region89: #{decoder_forward.1} parent=55 // pred_check
          %p2511 = pneg %p237
        $region90: #{decoder_forward.1} parent=55 // pred_check_branch
          %2513 = sbr.rel (%p2511) target = $region92
        $region91: #{decoder_forward.1} parent=55 // pred_region
          %s2514 = smul.u32 7, %s25
        $region92: #{decoder_forward.1} parent=55 // pred_fallthru
          _
      $region56: #{decoder_forward.1} parent=5 // pred_fallthru
        _
      %p2515 = scmp.le.s32.totalorder 2, %s20
      // Predicated region
      $region93: #{decoder_forward.1} parent=5 // pred_check
        %p2516 = pneg %p2515
      $region94: #{decoder_forward.1} parent=5 // pred_check_branch
        %2518 = sbr.rel (%p2516) target = $region96
      $region95: #{decoder_forward.1} parent=5 // pred_region
        %s2519 = ssub.s32 %s20, 2
        // Predicated region
        $region97: #{decoder_forward.1} parent=95 // pred_check
          %p2520 = pneg %p243
        $region98: #{decoder_forward.1} parent=95 // pred_check_branch
          %2522 = sbr.rel (%p2520) target = $region100
        $region99: #{decoder_forward.1} parent=95 // pred_region
          %s2523 = smul.u32 7, %s26
          %p2524 = scmp.lt.s32.totalorder %s2523, 13
          %s2525 = scalar_select %p2524, %s2523, 13
          %s2526 = smul.addr %s2525, 8
          %s2527 = smul.addr %s2526, 8
          %s2528 = scalar_lea.vmem %s9, %s2527
        $region100: #{decoder_forward.1} parent=95 // pred_fallthru
          _
      $region96: #{decoder_forward.1} parent=5 // pred_fallthru
        _
    $region6: #{decoder_forward.1} parent=1 // loop_footer
      %s24 = sadd.s32 1, %s20
    $region7: #{decoder_forward.1} parent=1 // loop_footer_branch
      %19 = sbr.rel target = $region3
    $region8: #{decoder_forward.1} parent=1 // loop_exit
      _
    %2529 = vsyncpa [#allocation3], 1
    %s2530 = scalar_lea.sflag [#allocation3], 1
    %2531 = vsyncpa %s2530, 1
    %2532 = vsyncpa [#allocation5], 1
    %2533 = vsyncpa [#allocation8], 1
    %2534 = vsyncpa [#allocation11], 1
    %2535 = vsyncpa [#allocation14], 1

</llo_original>
